<compile_context>
chip_gen: v5e
topology: v5e:2x2
jax: 0.10.0
libtpu: 0.0.40
codegen_flags: <defaults>
</compile_context>

<pallas_src>
import jax
import jax.numpy as jnp
from jax.experimental import pallas as pl
from jax.experimental.pallas import tpu as pltpu


def _linear_bn_relu(h_bf16, w_ref, gamma, beta, eps=1e-5):
    """Linear (MXU, bf16 operands / f32 accum) + folded BN + ReLU -> bf16."""
    z = jnp.dot(h_bf16, w_ref[...], preferred_element_type=jnp.float32)
    mu = jnp.mean(z, axis=0, keepdims=True)
    var = jnp.maximum(jnp.mean(z * z, axis=0, keepdims=True) - mu * mu, 0.0)
    scale = gamma * jax.lax.rsqrt(var + eps)       # EUP rsqrt (free slot)
    shift = beta - mu * scale
    # Producer-side bf16 cast: next layer consumes bf16 directly.
    return jnp.maximum(z * scale + shift, 0.0).astype(jnp.bfloat16)


def make_generator_kernel(hidden_dims, out_pad, eps=1e-5):
    n_hidden = len(hidden_dims)

    def kernel(z_ref, *refs):
        w_refs = refs[:n_hidden + 1]          # hidden weights + final weight
        p_ref = refs[n_hidden + 1]            # packed per-feature params
        o_ref = refs[n_hidden + 2]            # output

        p = p_ref[...]                        # (8, out_pad) f32, one DMA
        h = z_ref[...].astype(jnp.bfloat16)   # (B, z_dim)

        for i, d in enumerate(hidden_dims):
            gamma = p[2 * i:2 * i + 1, :d]
            beta = p[2 * i + 1:2 * i + 2, :d]
            h = _linear_bn_relu(h, w_refs[i], gamma, beta, eps)

        b_out = p[2 * n_hidden:2 * n_hidden + 1, :out_pad]
        logits = jnp.dot(h, w_refs[-1][...],
                         preferred_element_type=jnp.float32) + b_out
        # Sigmoid via EUP exp + EUP approx reciprocal (no VALU divide).
        e = jnp.exp(-logits)
        o_ref[...] = pl.reciprocal(1.0 + e, approx=True).astype(o_ref.dtype)

    return kernel


def generator_forward(z, kparams, hidden_dims, out_dim):
    """z: (B, z_dim) f32. kparams: (w1..w_{L}, w_out_padded, packed_params)."""
    B = z.shape[0]
    w_out = kparams[len(hidden_dims)]
    out_pad = w_out.shape[-1]
    vmem = pl.BlockSpec(memory_space=pltpu.MemorySpace.VMEM)
    kernel = make_generator_kernel(hidden_dims, out_pad)
    out = pl.pallas_call(
        kernel,
        out_shape=jax.ShapeDtypeStruct((B, out_pad), jnp.float32),
        in_specs=[vmem] * (1 + len(kparams)),
        out_specs=vmem,
    )(z, *kparams)
    return out[:, :out_dim]                    # drop the 784->896 lane padding


def init_generator_params(key, z_dim, hidden_layers, out_dim):
    """f32 'module' parameters (PyTorch-style uniform init).

    Linear weights stored as (in, out) = W.T relative to PyTorch's (out, in).
    Hidden Linear biases are intentionally omitted: under training-mode
    BatchNorm they are exactly cancelled, so the forward output is identical.
    """
    params = []
    dims = [z_dim] + list(hidden_layers)
    for i in range(len(hidden_layers)):
        fan_in, fan_out = dims[i], dims[i + 1]
        key, kw = jax.random.split(key)
        bound = 1.0 / float(fan_in) ** 0.5
        w = jax.random.uniform(kw, (fan_in, fan_out), jnp.float32, -bound, bound)
        gamma = jnp.ones((1, fan_out), jnp.float32)    # BatchNorm1d weight
        beta = jnp.zeros((1, fan_out), jnp.float32)    # BatchNorm1d bias
        params += [w, gamma, beta]
    fan_in = dims[-1]
    key, kw, kb = jax.random.split(key, 3)
    bound = 1.0 / float(fan_in) ** 0.5
    w = jax.random.uniform(kw, (fan_in, out_dim), jnp.float32, -bound, bound)
    b = jax.random.uniform(kb, (1, out_dim), jnp.float32, -bound, bound)
    params += [w, b]
    return tuple(params)


def to_kernel_params(params_f32, hidden_dims, out_dim):
    """Kernel-side params: bf16 weights (final one lane-padded to a multiple of
    128) plus ONE packed (8, out_pad) f32 array holding
    [g1, be1, g2, be2, g3, be3, b_out] row-wise (zero-padded)."""
    n_hidden = len(hidden_dims)
    ws, per_feature = [], []
    idx = 0
    for _ in range(n_hidden):
        w, g, beta = params_f32[idx:idx + 3]
        idx += 3
        ws.append(w.astype(jnp.bfloat16))
        per_feature += [g, beta]
    w_out, b_out = params_f32[idx], params_f32[idx + 1]
    out_pad = ((out_dim + 127) // 128) * 128
    pad = out_pad - out_dim
    ws.append(jnp.pad(w_out, ((0, 0), (0, pad))).astype(jnp.bfloat16))
    per_feature.append(jnp.pad(b_out, ((0, 0), (0, pad))))

    width = max(out_pad, max(hidden_dims))
    rows = ((len(per_feature) + 7) // 8) * 8
    packed = jnp.zeros((rows, width), jnp.float32)
    for r, v in enumerate(per_feature):
        packed = packed.at[r, :v.shape[-1]].set(v[0])
    return tuple(ws) + (packed,)


def reference_forward_mixed(z, params_f32, n_hidden, eps=1e-5):
    """Pure-JAX reference mirroring the kernel math (bf16 MXU operands, f32
    stats, folded BN with clamped variance). Only the kernel's approximate
    EUP reciprocal in the sigmoid differs."""
    h = z.astype(jnp.bfloat16)
    idx = 0
    for _ in range(n_hidden):
        w, g, beta = params_f32[idx:idx + 3]
        idx += 3
        zl = jnp.dot(h, w.astype(jnp.bfloat16), preferred_element_type=jnp.float32)
        mu = jnp.mean(zl, axis=0, keepdims=True)
        var = jnp.maximum(jnp.mean(zl * zl, axis=0, keepdims=True) - mu * mu, 0.0)
        scale = g * jax.lax.rsqrt(var + eps)
        shift = beta - mu * scale
        h = jnp.maximum(zl * scale + shift, 0.0).astype(jnp.bfloat16)
    w, b = params_f32[idx], params_f32[idx + 1]
    logits = jnp.dot(h, w.astype(jnp.bfloat16), preferred_element_type=jnp.float32) + b
    return 1.0 / (1.0 + jnp.exp(-logits))


def reference_forward_f32(z, params_f32, n_hidden, eps=1e-5):
    """Full-f32 reference with PyTorch training-mode BN semantics."""
    h = z
    idx = 0
    for _ in range(n_hidden):
        w, g, beta = params_f32[idx:idx + 3]
        idx += 3
        zl = h @ w                     # hidden bias omitted: cancelled by BN
        mu = jnp.mean(zl, axis=0, keepdims=True)
        var = jnp.mean((zl - mu) ** 2, axis=0, keepdims=True)
        zn = (zl - mu) / jnp.sqrt(var + eps) * g + beta
        h = jnp.maximum(zn, 0.0)
    w, b = params_f32[idx], params_f32[idx + 1]
    return 1.0 / (1.0 + jnp.exp(-(h @ w + b)))


if __name__ == "__main__":
    # B chosen as a multiple of 16 and >= 128 rows per the MXU-utilization
    # feedback; module-default layer sizes otherwise.
    B = 128
    Z_DIM = 10
    HIDDEN = [64, 128, 256]
    OUT_DIM = 28 * 28

    key = jax.random.PRNGKey(0)
    key, kz = jax.random.split(key)
    z = jax.random.normal(kz, (B, Z_DIM), jnp.float32)

    params_f32 = init_generator_params(key, Z_DIM, HIDDEN, OUT_DIM)
    kparams = to_kernel_params(params_f32, HIDDEN, OUT_DIM)

    out = generator_forward(z, kparams, HIDDEN, OUT_DIM)
    out = jax.block_until_ready(out)
    assert out.shape == (B, OUT_DIM), out.shape

    # Tight check vs. a pure-JAX reference mirroring the kernel math
    # (difference is only the approximate EUP reciprocal in the sigmoid).
    ref_mixed = reference_forward_mixed(z, params_f32, len(HIDDEN))
    err_mixed = float(jnp.max(jnp.abs(out - ref_mixed)))
    assert err_mixed < 5e-3, f"mixed-precision ref mismatch: max abs err = {err_mixed}"

    # Loose check vs. the full-f32 module-semantics reference (difference is
    # the bf16 MXU operands; sigmoid outputs -> absolute tolerance).
    ref_f32 = reference_forward_f32(z, params_f32, len(HIDDEN))
    err_f32 = float(jnp.max(jnp.abs(out - ref_f32)))
    assert err_f32 < 5e-2, f"f32 ref mismatch: max abs err = {err_f32}"

    print("KERNEL_OK")
</pallas_src>

<mosaic_0001>
module attributes {stable_mosaic.version = 11 : i64} {
  func.func @kernel(%arg0: memref<128x10xf32, #tpu.memory_space<vmem>>, %arg1: memref<10x64xbf16, #tpu.memory_space<vmem>>, %arg2: memref<64x128xbf16, #tpu.memory_space<vmem>>, %arg3: memref<128x256xbf16, #tpu.memory_space<vmem>>, %arg4: memref<256x896xbf16, #tpu.memory_space<vmem>>, %arg5: memref<8x896xf32, #tpu.memory_space<vmem>>, %arg6: memref<128x896xf32, #tpu.memory_space<vmem>>) attributes {dimension_semantics = [], scalar_prefetch = 0 : i64, scratch_operands = 0 : i64, tpu.core_type = #tpu.core_type<tc>} {
    %c0 = arith.constant 0 : index
    %c0_0 = arith.constant 0 : index
    %0 = vector.load %arg5[%c0, %c0_0] : memref<8x896xf32, #tpu.memory_space<vmem>>, vector<8x896xf32>
    %c0_1 = arith.constant 0 : index
    %c0_2 = arith.constant 0 : index
    %1 = vector.load %arg0[%c0_1, %c0_2] : memref<128x10xf32, #tpu.memory_space<vmem>>, vector<128x10xf32>
    %2 = arith.truncf %1 : vector<128x10xf32> to vector<128x10xbf16>
    %3 = vector.extract_strided_slice %0 {offsets = [0, 0], sizes = [1, 64], strides = [1, 1]} : vector<8x896xf32> to vector<1x64xf32>
    %4 = vector.extract_strided_slice %0 {offsets = [1, 0], sizes = [1, 64], strides = [1, 1]} : vector<8x896xf32> to vector<1x64xf32>
    %c0_3 = arith.constant 0 : index
    %c0_4 = arith.constant 0 : index
    %5 = vector.load %arg1[%c0_3, %c0_4] : memref<10x64xbf16, #tpu.memory_space<vmem>>, vector<10x64xbf16>
    %cst = arith.constant dense<0.000000e+00> : vector<128x64xf32>
    %6 = tpu.matmul %2, %5, %cst {dimension_numbers = #tpu.dot_dimension_numbers<[1], [0], [0], [1], [0, 0, 1, 1], [], []>} : vector<128x10xbf16>, vector<10x64xbf16>, vector<128x64xf32> -> vector<128x64xf32>
    %cst_5 = arith.constant dense<0.000000e+00> : vector<64xf32>
    %7 = vector.multi_reduction <add>, %6, %cst_5 [0] : vector<128x64xf32> to vector<64xf32>
    %8 = vector.shape_cast %7 : vector<64xf32> to vector<1x64xf32>
    %cst_6 = arith.constant 1.280000e+02 : f32
    %9 = vector.broadcast %cst_6 : f32 to vector<1x64xf32>
    %10 = arith.divf %8, %9 : vector<1x64xf32>
    %11 = arith.mulf %6, %6 : vector<128x64xf32>
    %cst_7 = arith.constant dense<0.000000e+00> : vector<64xf32>
    %12 = vector.multi_reduction <add>, %11, %cst_7 [0] : vector<128x64xf32> to vector<64xf32>
    %13 = vector.shape_cast %12 : vector<64xf32> to vector<1x64xf32>
    %cst_8 = arith.constant 1.280000e+02 : f32
    %14 = vector.broadcast %cst_8 : f32 to vector<1x64xf32>
    %15 = arith.divf %13, %14 : vector<1x64xf32>
    %16 = arith.mulf %10, %10 : vector<1x64xf32>
    %17 = arith.subf %15, %16 : vector<1x64xf32>
    %cst_9 = arith.constant 0.000000e+00 : f32
    %18 = vector.broadcast %cst_9 : f32 to vector<1x64xf32>
    %19 = arith.maximumf %17, %18 : vector<1x64xf32>
    %cst_10 = arith.constant 9.99999974E-6 : f32
    %20 = vector.broadcast %cst_10 : f32 to vector<1x64xf32>
    %21 = arith.addf %19, %20 : vector<1x64xf32>
    %22 = math.rsqrt %21 : vector<1x64xf32>
    %23 = arith.mulf %3, %22 : vector<1x64xf32>
    %24 = arith.mulf %10, %23 : vector<1x64xf32>
    %25 = arith.subf %4, %24 : vector<1x64xf32>
    %26 = vector.broadcast %23 : vector<1x64xf32> to vector<128x64xf32>
    %27 = arith.mulf %6, %26 : vector<128x64xf32>
    %28 = vector.broadcast %25 : vector<1x64xf32> to vector<128x64xf32>
    %29 = arith.addf %27, %28 : vector<128x64xf32>
    %cst_11 = arith.constant 0.000000e+00 : f32
    %30 = vector.broadcast %cst_11 : f32 to vector<128x64xf32>
    %31 = arith.maximumf %29, %30 : vector<128x64xf32>
    %32 = arith.truncf %31 : vector<128x64xf32> to vector<128x64xbf16>
    %33 = vector.extract_strided_slice %0 {offsets = [2, 0], sizes = [1, 128], strides = [1, 1]} : vector<8x896xf32> to vector<1x128xf32>
    %34 = vector.extract_strided_slice %0 {offsets = [3, 0], sizes = [1, 128], strides = [1, 1]} : vector<8x896xf32> to vector<1x128xf32>
    %c0_12 = arith.constant 0 : index
    %c0_13 = arith.constant 0 : index
    %35 = vector.load %arg2[%c0_12, %c0_13] : memref<64x128xbf16, #tpu.memory_space<vmem>>, vector<64x128xbf16>
    %cst_14 = arith.constant dense<0.000000e+00> : vector<128x128xf32>
    %36 = tpu.matmul %32, %35, %cst_14 {dimension_numbers = #tpu.dot_dimension_numbers<[1], [0], [0], [1], [0, 0, 1, 1], [], []>} : vector<128x64xbf16>, vector<64x128xbf16>, vector<128x128xf32> -> vector<128x128xf32>
    %cst_15 = arith.constant dense<0.000000e+00> : vector<128xf32>
    %37 = vector.multi_reduction <add>, %36, %cst_15 [0] : vector<128x128xf32> to vector<128xf32>
    %38 = vector.shape_cast %37 : vector<128xf32> to vector<1x128xf32>
    %cst_16 = arith.constant 1.280000e+02 : f32
    %39 = vector.broadcast %cst_16 : f32 to vector<1x128xf32>
    %40 = arith.divf %38, %39 : vector<1x128xf32>
    %41 = arith.mulf %36, %36 : vector<128x128xf32>
    %cst_17 = arith.constant dense<0.000000e+00> : vector<128xf32>
    %42 = vector.multi_reduction <add>, %41, %cst_17 [0] : vector<128x128xf32> to vector<128xf32>
    %43 = vector.shape_cast %42 : vector<128xf32> to vector<1x128xf32>
    %cst_18 = arith.constant 1.280000e+02 : f32
    %44 = vector.broadcast %cst_18 : f32 to vector<1x128xf32>
    %45 = arith.divf %43, %44 : vector<1x128xf32>
    %46 = arith.mulf %40, %40 : vector<1x128xf32>
    %47 = arith.subf %45, %46 : vector<1x128xf32>
    %cst_19 = arith.constant 0.000000e+00 : f32
    %48 = vector.broadcast %cst_19 : f32 to vector<1x128xf32>
    %49 = arith.maximumf %47, %48 : vector<1x128xf32>
    %cst_20 = arith.constant 9.99999974E-6 : f32
    %50 = vector.broadcast %cst_20 : f32 to vector<1x128xf32>
    %51 = arith.addf %49, %50 : vector<1x128xf32>
    %52 = math.rsqrt %51 : vector<1x128xf32>
    %53 = arith.mulf %33, %52 : vector<1x128xf32>
    %54 = arith.mulf %40, %53 : vector<1x128xf32>
    %55 = arith.subf %34, %54 : vector<1x128xf32>
    %56 = vector.broadcast %53 : vector<1x128xf32> to vector<128x128xf32>
    %57 = arith.mulf %36, %56 : vector<128x128xf32>
    %58 = vector.broadcast %55 : vector<1x128xf32> to vector<128x128xf32>
    %59 = arith.addf %57, %58 : vector<128x128xf32>
    %cst_21 = arith.constant 0.000000e+00 : f32
    %60 = vector.broadcast %cst_21 : f32 to vector<128x128xf32>
    %61 = arith.maximumf %59, %60 : vector<128x128xf32>
    %62 = arith.truncf %61 : vector<128x128xf32> to vector<128x128xbf16>
    %63 = vector.extract_strided_slice %0 {offsets = [4, 0], sizes = [1, 256], strides = [1, 1]} : vector<8x896xf32> to vector<1x256xf32>
    %64 = vector.extract_strided_slice %0 {offsets = [5, 0], sizes = [1, 256], strides = [1, 1]} : vector<8x896xf32> to vector<1x256xf32>
    %c0_22 = arith.constant 0 : index
    %c0_23 = arith.constant 0 : index
    %65 = vector.load %arg3[%c0_22, %c0_23] : memref<128x256xbf16, #tpu.memory_space<vmem>>, vector<128x256xbf16>
    %cst_24 = arith.constant dense<0.000000e+00> : vector<128x256xf32>
    %66 = tpu.matmul %62, %65, %cst_24 {dimension_numbers = #tpu.dot_dimension_numbers<[1], [0], [0], [1], [0, 0, 1, 1], [], []>} : vector<128x128xbf16>, vector<128x256xbf16>, vector<128x256xf32> -> vector<128x256xf32>
    %cst_25 = arith.constant dense<0.000000e+00> : vector<256xf32>
    %67 = vector.multi_reduction <add>, %66, %cst_25 [0] : vector<128x256xf32> to vector<256xf32>
    %68 = vector.shape_cast %67 : vector<256xf32> to vector<1x256xf32>
    %cst_26 = arith.constant 1.280000e+02 : f32
    %69 = vector.broadcast %cst_26 : f32 to vector<1x256xf32>
    %70 = arith.divf %68, %69 : vector<1x256xf32>
    %71 = arith.mulf %66, %66 : vector<128x256xf32>
    %cst_27 = arith.constant dense<0.000000e+00> : vector<256xf32>
    %72 = vector.multi_reduction <add>, %71, %cst_27 [0] : vector<128x256xf32> to vector<256xf32>
    %73 = vector.shape_cast %72 : vector<256xf32> to vector<1x256xf32>
    %cst_28 = arith.constant 1.280000e+02 : f32
    %74 = vector.broadcast %cst_28 : f32 to vector<1x256xf32>
    %75 = arith.divf %73, %74 : vector<1x256xf32>
    %76 = arith.mulf %70, %70 : vector<1x256xf32>
    %77 = arith.subf %75, %76 : vector<1x256xf32>
    %cst_29 = arith.constant 0.000000e+00 : f32
    %78 = vector.broadcast %cst_29 : f32 to vector<1x256xf32>
    %79 = arith.maximumf %77, %78 : vector<1x256xf32>
    %cst_30 = arith.constant 9.99999974E-6 : f32
    %80 = vector.broadcast %cst_30 : f32 to vector<1x256xf32>
    %81 = arith.addf %79, %80 : vector<1x256xf32>
    %82 = math.rsqrt %81 : vector<1x256xf32>
    %83 = arith.mulf %63, %82 : vector<1x256xf32>
    %84 = arith.mulf %70, %83 : vector<1x256xf32>
    %85 = arith.subf %64, %84 : vector<1x256xf32>
    %86 = vector.broadcast %83 : vector<1x256xf32> to vector<128x256xf32>
    %87 = arith.mulf %66, %86 : vector<128x256xf32>
    %88 = vector.broadcast %85 : vector<1x256xf32> to vector<128x256xf32>
    %89 = arith.addf %87, %88 : vector<128x256xf32>
    %cst_31 = arith.constant 0.000000e+00 : f32
    %90 = vector.broadcast %cst_31 : f32 to vector<128x256xf32>
    %91 = arith.maximumf %89, %90 : vector<128x256xf32>
    %92 = arith.truncf %91 : vector<128x256xf32> to vector<128x256xbf16>
    %93 = vector.extract_strided_slice %0 {offsets = [6, 0], sizes = [1, 896], strides = [1, 1]} : vector<8x896xf32> to vector<1x896xf32>
    %c0_32 = arith.constant 0 : index
    %c0_33 = arith.constant 0 : index
    %94 = vector.load %arg4[%c0_32, %c0_33] : memref<256x896xbf16, #tpu.memory_space<vmem>>, vector<256x896xbf16>
    %cst_34 = arith.constant dense<0.000000e+00> : vector<128x896xf32>
    %95 = tpu.matmul %92, %94, %cst_34 {dimension_numbers = #tpu.dot_dimension_numbers<[1], [0], [0], [1], [0, 0, 1, 1], [], []>} : vector<128x256xbf16>, vector<256x896xbf16>, vector<128x896xf32> -> vector<128x896xf32>
    %96 = vector.broadcast %93 : vector<1x896xf32> to vector<128x896xf32>
    %97 = arith.addf %95, %96 : vector<128x896xf32>
    %cst_35 = arith.constant 0.000000e+00 : f32
    %98 = vector.broadcast %cst_35 : f32 to vector<128x896xf32>
    %99 = arith.subf %98, %97 : vector<128x896xf32>
    %100 = math.exp %99 : vector<128x896xf32>
    %cst_36 = arith.constant 1.000000e+00 : f32
    %101 = vector.broadcast %cst_36 : f32 to vector<128x896xf32>
    %102 = arith.addf %101, %100 : vector<128x896xf32>
    %103 = tpu.reciprocal %102 {approx = true} : vector<128x896xf32> -> vector<128x896xf32>
    %c0_37 = arith.constant 0 : index
    %c0_38 = arith.constant 0 : index
    %104 = vector.load %arg6[%c0_37, %c0_38] : memref<128x896xf32, #tpu.memory_space<vmem>>, vector<128x896xf32>
    tpu.vector_store %arg6[%c0_37, %c0_38], %103 {strides = array<i32>} : memref<128x896xf32, #tpu.memory_space<vmem>>, vector<128x896xf32>,
    return
  }
}

</mosaic_0001>

<llo_original>
// kernel: tpu_custom_call.1
$region0: #{tpu_custom_call.1}
  #allocation0 [shape = 'u32[]', space=smem, size = 0x4, offset = 0x4, fixed_abs, tag = 'smem constant byte address 0x4 - core index']
  #allocation1 [shape = 'u32[72,128]{1,0:T(1,128)}', space=vmem, size = 0x9000, scoped, tag = 'internal scratch']
  %s0 = inlined_call_operand.vmem [shape: f32[128,10], index: 0, kind: input, shape index: {}]
  %s1 = inlined_call_operand.vmem [shape: bf16[10,64], index: 1, kind: input, shape index: {}]
  %s2 = inlined_call_operand.hbm [shape: bf16[64,128], index: 2, kind: input, shape index: {}]
  %s3 = inlined_call_operand.vmem [shape: bf16[128,256], index: 3, kind: input, shape index: {}]
  %s4 = inlined_call_operand.hbm [shape: bf16[256,896], index: 4, kind: input, shape index: {}]
  %s5 = inlined_call_operand.hbm [shape: f32[8,896], index: 5, kind: input, shape index: {}]
  %s6 = inlined_call_operand.hbm [shape: f32[128,896], index: 6, kind: output, shape index: {}]
  %s7 = sld [smem:[#allocation0]]
  $region46: #{tpu_custom_call.1} parent=0
    _
  %s9 = ssub.s32 1, %s7
  %s10 = scalar_select 0, %s9, %s7
  $region1: #{tpu_custom_call.1} parent=0
    #allocation2 [shape = 'u8[16384]{0}', space=vmem, size = 0x4000, scoped, tag = 'input window, operand 2, single buffered']
    #allocation3 [shape = 's32[1]{0}', space=sflag, size = 0x4, scoped, tag = 'scoped memory for tpu_custom_call.1']
    #allocation4 [shape = 's32[1]{0}', space=sflag, size = 0x4, scoped, tag = 'scoped memory for tpu_custom_call.1']
    #allocation5 [shape = 'u8[458752]{0}', space=vmem, size = 0x70000, scoped, tag = 'input window, operand 4, single buffered']
    #allocation6 [shape = 's32[1]{0}', space=sflag, size = 0x4, scoped, tag = 'scoped memory for tpu_custom_call.1']
    #allocation7 [shape = 'u8[28672]{0}', space=vmem, size = 0x7000, scoped, tag = 'input window, operand 5, single buffered']
    #allocation8 [shape = 'u8[458752]{0}', space=vmem, size = 0x70000, scoped, tag = 'output window, operand 0, single buffered']
    %11 = vsyncpa [#allocation3], 0
    %12 = vsyncpa [#allocation6], 0
    %13 = vsyncpa [#allocation4], 0
    // Predicated region
    $region2: #{tpu_custom_call.1} parent=1 // pred_check
      _
    $region3: #{tpu_custom_call.1} parent=1 // pred_check_branch
      %15 = sbr.rel (0) target = $region5
    $region4: #{tpu_custom_call.1} parent=1 // pred_region
      _
    $region5: #{tpu_custom_call.1} parent=1 // pred_fallthru
      _
    // Predicated region
    $region6: #{tpu_custom_call.1} parent=1 // pred_check
      _
    $region7: #{tpu_custom_call.1} parent=1 // pred_check_branch
      %17 = sbr.rel (0) target = $region9
    $region8: #{tpu_custom_call.1} parent=1 // pred_region
      _
    $region9: #{tpu_custom_call.1} parent=1 // pred_fallthru
      _
    // Predicated region
    $region10: #{tpu_custom_call.1} parent=1 // pred_check
      _
    $region11: #{tpu_custom_call.1} parent=1 // pred_check_branch
      %19 = sbr.rel (0) target = $region13
    $region12: #{tpu_custom_call.1} parent=1 // pred_region
      %21 = vsyncadd [#allocation3], 0
      %s22 = sshll.u32 %s2, 4
      %s23 = int_to_ptr.hbm [resolvable:$true] %s22
      %s24 = sshll.u32 [#allocation2], 4
      %s25 = int_to_ptr.vmem [resolvable:$true] %s24
      %30 = dma.hbm_to_vmem [thread:$0]  %s23, 512, %s25, [#allocation3], 64, 64, 4
    $region13: #{tpu_custom_call.1} parent=1 // pred_fallthru
      _
    // Predicated region
    $region14: #{tpu_custom_call.1} parent=1 // pred_check
      _
    $region15: #{tpu_custom_call.1} parent=1 // pred_check_branch
      %32 = sbr.rel (0) target = $region17
    $region16: #{tpu_custom_call.1} parent=1 // pred_region
      _
    $region17: #{tpu_custom_call.1} parent=1 // pred_fallthru
      _
    // Predicated region
    $region18: #{tpu_custom_call.1} parent=1 // pred_check
      _
    $region19: #{tpu_custom_call.1} parent=1 // pred_check_branch
      %34 = sbr.rel (0) target = $region21
    $region20: #{tpu_custom_call.1} parent=1 // pred_region
      %36 = vsyncadd [#allocation6], 0
      %s37 = sshll.u32 %s4, 4
      %s38 = int_to_ptr.hbm [resolvable:$true] %s37
      %s39 = sshll.u32 [#allocation5], 4
      %s40 = int_to_ptr.vmem [resolvable:$true] %s39
      %45 = dma.hbm_to_vmem [thread:$0]  %s38, 14336, %s40, [#allocation6], 448, 448, 28
    $region21: #{tpu_custom_call.1} parent=1 // pred_fallthru
      _
    // Predicated region
    $region22: #{tpu_custom_call.1} parent=1 // pred_check
      _
    $region23: #{tpu_custom_call.1} parent=1 // pred_check_branch
      %47 = sbr.rel (0) target = $region25
    $region24: #{tpu_custom_call.1} parent=1 // pred_region
      %49 = vsyncadd [#allocation6], 0
      %s51 = sshll.u32 %s5, 4
      %s52 = int_to_ptr.hbm [resolvable:$true] %s51
      %s53 = sshll.u32 [#allocation7], 4
      %s54 = int_to_ptr.vmem [resolvable:$true] %s53
      %56 = dma.hbm_to_vmem [thread:$0]  %s52, 896, %s54, [#allocation6]
    $region25: #{tpu_custom_call.1} parent=1 // pred_fallthru
      _
    // Predicated region
    $region26: #{tpu_custom_call.1} parent=1 // pred_check
      _
    $region27: #{tpu_custom_call.1} parent=1 // pred_check_branch
      %58 = sbr.rel (0) target = $region29
    $region28: #{tpu_custom_call.1} parent=1 // pred_region
      %60 = dma.done [#allocation3], 512
    $region29: #{tpu_custom_call.1} parent=1 // pred_fallthru
      _
    // Predicated region
    $region30: #{tpu_custom_call.1} parent=1 // pred_check
      _
    $region31: #{tpu_custom_call.1} parent=1 // pred_check_branch
      %62 = sbr.rel (0) target = $region33
    $region32: #{tpu_custom_call.1} parent=1 // pred_region
      %64 = dma.done [#allocation6], 14336
    $region33: #{tpu_custom_call.1} parent=1 // pred_fallthru
      _
    // Predicated region
    $region34: #{tpu_custom_call.1} parent=1 // pred_check
      _
    $region35: #{tpu_custom_call.1} parent=1 // pred_check_branch
      %66 = sbr.rel (0) target = $region37
    $region36: #{tpu_custom_call.1} parent=1 // pred_region
      %68 = dma.done [#allocation6], 896
    $region37: #{tpu_custom_call.1} parent=1 // pred_fallthru
      _
    %v70 = vld [vmem:[#allocation7] sm:$0xff]
    %v71 = vld [vmem:[#allocation7 + $0x8] sm:$0xff]
    %v72 = vld [vmem:[#allocation7 + $0x10] sm:$0xff]
    %v73 = vld [vmem:[#allocation7 + $0x18] sm:$0xff]
    %v74 = vld [vmem:[#allocation7 + $0x20] sm:$0xff]
    %v75 = vld [vmem:[#allocation7 + $0x28] sm:$0xff]
    %v76 = vld [vmem:[#allocation7 + $0x30] sm:$0xff]
    %v77 = vld [vmem:[%s0] sm:$0xff]
    %v78 = vld [vmem:[%s0 + $0x8] sm:$0xff]
    %v79 = vld [vmem:[%s0 + $0x10] sm:$0xff]
    %v80 = vld [vmem:[%s0 + $0x18] sm:$0xff]
    %v81 = vld [vmem:[%s0 + $0x20] sm:$0xff]
    %v82 = vld [vmem:[%s0 + $0x28] sm:$0xff]
    %v83 = vld [vmem:[%s0 + $0x30] sm:$0xff]
    %v84 = vld [vmem:[%s0 + $0x38] sm:$0xff]
    %v85 = vld [vmem:[%s0 + $0x40] sm:$0xff]
    %v86 = vld [vmem:[%s0 + $0x48] sm:$0xff]
    %v87 = vld [vmem:[%s0 + $0x50] sm:$0xff]
    %v88 = vld [vmem:[%s0 + $0x58] sm:$0xff]
    %v89 = vld [vmem:[%s0 + $0x60] sm:$0xff]
    %v90 = vld [vmem:[%s0 + $0x68] sm:$0xff]
    %v91 = vld [vmem:[%s0 + $0x70] sm:$0xff]
    %v92 = vld [vmem:[%s0 + $0x78] sm:$0xff]
    %v93 = vpack.c.bf16 %v78, %v77
    %v94 = vpack.c.bf16 %v80, %v79
    %v95 = vpack.c.bf16 %v82, %v81
    %v96 = vpack.c.bf16 %v84, %v83
    %v97 = vpack.c.bf16 %v86, %v85
    %v98 = vpack.c.bf16 %v88, %v87
    %v99 = vpack.c.bf16 %v90, %v89
    %v100 = vpack.c.bf16 %v92, %v91
    %v101 = vld [vmem:[%s1] sm:$0xf]
    %v102 = vld [vmem:[%s1 + $0x4] sm:$0x1]
    %v105 = vunpack.c.l.b16 %v101
    %v106 = vunpack.c.l.b16 %v102
    %v107 = vpack.c.b16 %v106, %v105
    %vm108 = vcmask 80896
    %v110 = vsel %vm108, %v93, 0
    %v113 = vsel %vm108, %v94, 0
    %v116 = vsel %vm108, %v95, 0
    %v119 = vsel %vm108, %v96, 0
    %v122 = vsel %vm108, %v97, 0
    %v125 = vsel %vm108, %v98, 0
    %v128 = vsel %vm108, %v99, 0
    %v131 = vsel %vm108, %v100, 0
    %vm133 = vcmask 1044480
    %v135 = vsel %vm133, %v107, 0
    %137 = vmatpush.bf16.msra.mxu0 0
    %138 = vmatpush.bf16.msra.mxu0 0
    %139 = vmatpush.bf16.msra.mxu0 0
    %140 = vmatpush.bf16.msra.mxu0 0
    %141 = vmatpush.bf16.msra.mxu0 0
    %142 = vmatpush.bf16.msra.mxu0 0
    %143 = vmatpush.bf16.msra.mxu0 0
    %144 = vmatpush.bf16.msra.mxu0 %v135
    %145 = vmatmul.bf16.gmra.mxu0 %v110
    %v146 = vpop.f32.mrf.mxu0
    %v147 = vadd.f32 0.0, %v146
    %v148 = vpop.f32.mrf.mxu0
    %v149 = vadd.f32 0.0, %v148
    %150 = vmatmul.bf16.gmra.mxu0 %v113
    %v151 = vpop.f32.mrf.mxu0
    %v152 = vadd.f32 0.0, %v151
    %v153 = vpop.f32.mrf.mxu0
    %v154 = vadd.f32 0.0, %v153
    %155 = vmatmul.bf16.gmra.mxu0 %v116
    %v156 = vpop.f32.mrf.mxu0
    %v157 = vadd.f32 0.0, %v156
    %v158 = vpop.f32.mrf.mxu0
    %v159 = vadd.f32 0.0, %v158
    %160 = vmatmul.bf16.gmra.mxu0 %v119
    %v161 = vpop.f32.mrf.mxu0
    %v162 = vadd.f32 0.0, %v161
    %v163 = vpop.f32.mrf.mxu0
    %v164 = vadd.f32 0.0, %v163
    %165 = vmatmul.bf16.gmra.mxu0 %v122
    %v166 = vpop.f32.mrf.mxu0
    %v167 = vadd.f32 0.0, %v166
    %v168 = vpop.f32.mrf.mxu0
    %v169 = vadd.f32 0.0, %v168
    %170 = vmatmul.bf16.gmra.mxu0 %v125
    %v171 = vpop.f32.mrf.mxu0
    %v172 = vadd.f32 0.0, %v171
    %v173 = vpop.f32.mrf.mxu0
    %v174 = vadd.f32 0.0, %v173
    %175 = vmatmul.bf16.gmra.mxu0 %v128
    %v176 = vpop.f32.mrf.mxu0
    %v177 = vadd.f32 0.0, %v176
    %v178 = vpop.f32.mrf.mxu0
    %v179 = vadd.f32 0.0, %v178
    %180 = vmatmul.bf16.gmra.mxu0 %v131
    %v181 = vpop.f32.mrf.mxu0
    %v182 = vadd.f32 0.0, %v181
    %v183 = vpop.f32.mrf.mxu0
    %v184 = vadd.f32 0.0, %v183
    %185 = vdwg.mxu0
    %vm186 = vcmask 523264
    %v187 = vsel %vm186, %v147, 0.0
    %v188 = vsel %vm186, %v149, 0.0
    %v189 = vadd.f32 %v187, %v188
    %v190 = vsel %vm186, %v152, 0.0
    %v191 = vadd.f32 %v189, %v190
    %v192 = vsel %vm186, %v154, 0.0
    %v193 = vadd.f32 %v191, %v192
    %v194 = vsel %vm186, %v157, 0.0
    %v195 = vadd.f32 %v193, %v194
    %v196 = vsel %vm186, %v159, 0.0
    %v197 = vadd.f32 %v195, %v196
    %v198 = vsel %vm186, %v162, 0.0
    %v199 = vadd.f32 %v197, %v198
    %v200 = vsel %vm186, %v164, 0.0
    %v201 = vadd.f32 %v199, %v200
    %v202 = vsel %vm186, %v167, 0.0
    %v203 = vadd.f32 %v201, %v202
    %v204 = vsel %vm186, %v169, 0.0
    %v205 = vadd.f32 %v203, %v204
    %v206 = vsel %vm186, %v172, 0.0
    %v207 = vadd.f32 %v205, %v206
    %v208 = vsel %vm186, %v174, 0.0
    %v209 = vadd.f32 %v207, %v208
    %v210 = vsel %vm186, %v177, 0.0
    %v211 = vadd.f32 %v209, %v210
    %v212 = vsel %vm186, %v179, 0.0
    %v213 = vadd.f32 %v211, %v212
    %v214 = vsel %vm186, %v182, 0.0
    %v215 = vadd.f32 %v213, %v214
    %v216 = vsel %vm186, %v184, 0.0
    %v217 = vadd.f32 %v215, %v216
    %v218 = vrot.slane %v217, 4
    %v219 = vadd.f32 %v217, %v218
    %v220 = vrot.slane %v219, 2
    %v221 = vadd.f32 %v219, %v220
    %v222 = vrot.slane %v221, 1
    %v223 = vadd.f32 %v221, %v222
    %v224 = vrcp.pop 128.0
    %v225 = vmul.f32 128.0, %v224
    %v226 = vsub.f32 1.0, %v225
    %v227 = vmul.f32 %v224, %v226
    %v228 = vadd.f32 %v224, %v227
    %vm229 = vweird.f32 %v224
    %v230 = vsel %vm229, %v224, %v228
    %v231 = vmul.f32 %v223, %v230
    %v232 = vmul.f32 %v147, %v147
    %v233 = vmul.f32 %v149, %v149
    %v234 = vmul.f32 %v152, %v152
    %v235 = vmul.f32 %v154, %v154
    %v236 = vmul.f32 %v157, %v157
    %v237 = vmul.f32 %v159, %v159
    %v238 = vmul.f32 %v162, %v162
    %v239 = vmul.f32 %v164, %v164
    %v240 = vmul.f32 %v167, %v167
    %v241 = vmul.f32 %v169, %v169
    %v242 = vmul.f32 %v172, %v172
    %v243 = vmul.f32 %v174, %v174
    %v244 = vmul.f32 %v177, %v177
    %v245 = vmul.f32 %v179, %v179
    %v246 = vmul.f32 %v182, %v182
    %v247 = vmul.f32 %v184, %v184
    %v248 = vsel %vm186, %v232, 0.0
    %v249 = vsel %vm186, %v233, 0.0
    %v250 = vadd.f32 %v248, %v249
    %v251 = vsel %vm186, %v234, 0.0
    %v252 = vadd.f32 %v250, %v251
    %v253 = vsel %vm186, %v235, 0.0
    %v254 = vadd.f32 %v252, %v253
    %v255 = vsel %vm186, %v236, 0.0
    %v256 = vadd.f32 %v254, %v255
    %v257 = vsel %vm186, %v237, 0.0
    %v258 = vadd.f32 %v256, %v257
    %v259 = vsel %vm186, %v238, 0.0
    %v260 = vadd.f32 %v258, %v259
    %v261 = vsel %vm186, %v239, 0.0
    %v262 = vadd.f32 %v260, %v261
    %v263 = vsel %vm186, %v240, 0.0
    %v264 = vadd.f32 %v262, %v263
    %v265 = vsel %vm186, %v241, 0.0
    %v266 = vadd.f32 %v264, %v265
    %v267 = vsel %vm186, %v242, 0.0
    %v268 = vadd.f32 %v266, %v267
    %v269 = vsel %vm186, %v243, 0.0
    %v270 = vadd.f32 %v268, %v269
    %v271 = vsel %vm186, %v244, 0.0
    %v272 = vadd.f32 %v270, %v271
    %v273 = vsel %vm186, %v245, 0.0
    %v274 = vadd.f32 %v272, %v273
    %v275 = vsel %vm186, %v246, 0.0
    %v276 = vadd.f32 %v274, %v275
    %v277 = vsel %vm186, %v247, 0.0
    %v278 = vadd.f32 %v276, %v277
    %v279 = vrot.slane %v278, 4
    %v280 = vadd.f32 %v278, %v279
    %v281 = vrot.slane %v280, 2
    %v282 = vadd.f32 %v280, %v281
    %v283 = vrot.slane %v282, 1
    %v284 = vadd.f32 %v282, %v283
    %v285 = vmul.f32 %v284, %v230
    %v286 = vmul.f32 %v231, %v231
    %v287 = vsub.f32 %v285, %v286
    %v288 = vmax.f32 %v287, 0.0
    %v289 = vadd.f32 %v288, 1e-05
    %v290 = vrsqrt.pop %v289
    %v291 = vmul.f32 %v290, %v289
    %v292 = vmul.f32 %v291, %v290
    %v293 = vmul.f32 0.5, %v292
    %v294 = vsub.f32 1.5, %v293
    %v295 = vmul.f32 %v290, %v294
    %vm296 = vweird.f32 %v289
    %vm297 = vweird.f32 %v290
    %vm298 = vmor %vm296, %vm297
    %v299 = vsel %vm298, %v290, %v295
    %v300 = vmul.f32 %v70, %v299
    %v301 = vmul.f32 %v231, %v300
    %v303 = vrot.slane %v301, 7
    %v305 = vsub.f32 %v70, %v303
    %v306 = vperm.slane %v300, 0
    %v307 = vmul.f32 %v147, %v306
    %v308 = vmul.f32 %v149, %v306
    %v309 = vmul.f32 %v152, %v306
    %v310 = vmul.f32 %v154, %v306
    %v311 = vmul.f32 %v157, %v306
    %v312 = vmul.f32 %v159, %v306
    %v313 = vmul.f32 %v162, %v306
    %v314 = vmul.f32 %v164, %v306
    %v315 = vmul.f32 %v167, %v306
    %v316 = vmul.f32 %v169, %v306
    %v317 = vmul.f32 %v172, %v306
    %v318 = vmul.f32 %v174, %v306
    %v319 = vmul.f32 %v177, %v306
    %v320 = vmul.f32 %v179, %v306
    %v321 = vmul.f32 %v182, %v306
    %v322 = vmul.f32 %v184, %v306
    %v323 = vperm.slane %v305, 1
    %v324 = vadd.f32 %v307, %v323
    %v325 = vadd.f32 %v308, %v323
    %v326 = vadd.f32 %v309, %v323
    %v327 = vadd.f32 %v310, %v323
    %v328 = vadd.f32 %v311, %v323
    %v329 = vadd.f32 %v312, %v323
    %v330 = vadd.f32 %v313, %v323
    %v331 = vadd.f32 %v314, %v323
    %v332 = vadd.f32 %v315, %v323
    %v333 = vadd.f32 %v316, %v323
    %v334 = vadd.f32 %v317, %v323
    %v335 = vadd.f32 %v318, %v323
    %v336 = vadd.f32 %v319, %v323
    %v337 = vadd.f32 %v320, %v323
    %v338 = vadd.f32 %v321, %v323
    %v339 = vadd.f32 %v322, %v323
    %v340 = vmax.f32 %v324, 0.0
    %v341 = vmax.f32 %v325, 0.0
    %v342 = vmax.f32 %v326, 0.0
    %v343 = vmax.f32 %v327, 0.0
    %v344 = vmax.f32 %v328, 0.0
    %v345 = vmax.f32 %v329, 0.0
    %v346 = vmax.f32 %v330, 0.0
    %v347 = vmax.f32 %v331, 0.0
    %v348 = vmax.f32 %v332, 0.0
    %v349 = vmax.f32 %v333, 0.0
    %v350 = vmax.f32 %v334, 0.0
    %v351 = vmax.f32 %v335, 0.0
    %v352 = vmax.f32 %v336, 0.0
    %v353 = vmax.f32 %v337, 0.0
    %v354 = vmax.f32 %v338, 0.0
    %v355 = vmax.f32 %v339, 0.0
    %v356 = vpack.c.bf16 %v341, %v340
    %v357 = vpack.c.bf16 %v343, %v342
    %v358 = vpack.c.bf16 %v345, %v344
    %v359 = vpack.c.bf16 %v347, %v346
    %v360 = vpack.c.bf16 %v349, %v348
    %v361 = vpack.c.bf16 %v351, %v350
    %v362 = vpack.c.bf16 %v353, %v352
    %v363 = vpack.c.bf16 %v355, %v354
    %v364 = vld [vmem:[#allocation2] sm:$0xf]
    %v365 = vld [vmem:[#allocation2 + $0x4] sm:$0xf]
    %v366 = vld [vmem:[#allocation2 + $0x8] sm:$0xf]
    %v367 = vld [vmem:[#allocation2 + $0xc] sm:$0xf]
    %v368 = vld [vmem:[#allocation2 + $0x10] sm:$0xf]
    %v369 = vld [vmem:[#allocation2 + $0x14] sm:$0xf]
    %v370 = vld [vmem:[#allocation2 + $0x18] sm:$0xf]
    %v371 = vld [vmem:[#allocation2 + $0x1c] sm:$0xf]
    %v380 = vunpack.c.l.b16 %v364
    %v381 = vunpack.c.l.b16 %v365
    %v382 = vunpack.c.l.b16 %v366
    %v383 = vunpack.c.l.b16 %v367
    %v384 = vunpack.c.l.b16 %v368
    %v385 = vunpack.c.l.b16 %v369
    %v386 = vunpack.c.l.b16 %v370
    %v387 = vunpack.c.l.b16 %v371
    %v388 = vpack.c.b16 %v381, %v380
    %v389 = vpack.c.b16 %v383, %v382
    %v390 = vpack.c.b16 %v385, %v384
    %v391 = vpack.c.b16 %v387, %v386
    %v397 = vsel %vm186, %v356, 0
    %v400 = vsel %vm186, %v357, 0
    %v403 = vsel %vm186, %v358, 0
    %v406 = vsel %vm186, %v359, 0
    %v409 = vsel %vm186, %v360, 0
    %v412 = vsel %vm186, %v361, 0
    %v415 = vsel %vm186, %v362, 0
    %v418 = vsel %vm186, %v363, 0
    %420 = vmatpush.bf16.msra.mxu0 0
    %421 = vmatpush.bf16.msra.mxu0 0
    %422 = vmatpush.bf16.msra.mxu0 0
    %423 = vmatpush.bf16.msra.mxu0 0
    %424 = vmatpush.bf16.msra.mxu0 %v391
    %425 = vmatpush.bf16.msra.mxu0 %v390
    %426 = vmatpush.bf16.msra.mxu0 %v389
    %427 = vmatpush.bf16.msra.mxu0 %v388
    %428 = vmatmul.bf16.gmra.mxu0 %v397
    %v429 = vpop.f32.mrf.mxu0
    %v430 = vadd.f32 0.0, %v429
    %v431 = vpop.f32.mrf.mxu0
    %v432 = vadd.f32 0.0, %v431
    %433 = vmatmul.bf16.gmra.mxu0 %v400
    %v434 = vpop.f32.mrf.mxu0
    %v435 = vadd.f32 0.0, %v434
    %v436 = vpop.f32.mrf.mxu0
    %v437 = vadd.f32 0.0, %v436
    %438 = vmatmul.bf16.gmra.mxu0 %v403
    %v439 = vpop.f32.mrf.mxu0
    %v440 = vadd.f32 0.0, %v439
    %v441 = vpop.f32.mrf.mxu0
    %v442 = vadd.f32 0.0, %v441
    %443 = vmatmul.bf16.gmra.mxu0 %v406
    %v444 = vpop.f32.mrf.mxu0
    %v445 = vadd.f32 0.0, %v444
    %v446 = vpop.f32.mrf.mxu0
    %v447 = vadd.f32 0.0, %v446
    %448 = vmatmul.bf16.gmra.mxu0 %v409
    %v449 = vpop.f32.mrf.mxu0
    %v450 = vadd.f32 0.0, %v449
    %v451 = vpop.f32.mrf.mxu0
    %v452 = vadd.f32 0.0, %v451
    %453 = vmatmul.bf16.gmra.mxu0 %v412
    %v454 = vpop.f32.mrf.mxu0
    %v455 = vadd.f32 0.0, %v454
    %v456 = vpop.f32.mrf.mxu0
    %v457 = vadd.f32 0.0, %v456
    %458 = vmatmul.bf16.gmra.mxu0 %v415
    %v459 = vpop.f32.mrf.mxu0
    %v460 = vadd.f32 0.0, %v459
    %v461 = vpop.f32.mrf.mxu0
    %v462 = vadd.f32 0.0, %v461
    %463 = vmatmul.bf16.gmra.mxu0 %v418
    %v464 = vpop.f32.mrf.mxu0
    %v465 = vadd.f32 0.0, %v464
    %v466 = vpop.f32.mrf.mxu0
    %v467 = vadd.f32 0.0, %v466
    %468 = vdwg.mxu0
    %v469 = vadd.f32 %v430, %v432
    %v470 = vadd.f32 %v469, %v435
    %v471 = vadd.f32 %v470, %v437
    %v472 = vadd.f32 %v471, %v440
    %v473 = vadd.f32 %v472, %v442
    %v474 = vadd.f32 %v473, %v445
    %v475 = vadd.f32 %v474, %v447
    %v476 = vadd.f32 %v475, %v450
    %v477 = vadd.f32 %v476, %v452
    %v478 = vadd.f32 %v477, %v455
    %v479 = vadd.f32 %v478, %v457
    %v480 = vadd.f32 %v479, %v460
    %v481 = vadd.f32 %v480, %v462
    %v482 = vadd.f32 %v481, %v465
    %v483 = vadd.f32 %v482, %v467
    %v484 = vrot.slane %v483, 4
    %v485 = vadd.f32 %v483, %v484
    %v486 = vrot.slane %v485, 2
    %v487 = vadd.f32 %v485, %v486
    %v488 = vrot.slane %v487, 1
    %v489 = vadd.f32 %v487, %v488
    %v490 = vmul.f32 %v489, %v230
    %v491 = vmul.f32 %v430, %v430
    %v492 = vmul.f32 %v432, %v432
    %v493 = vmul.f32 %v435, %v435
    %v494 = vmul.f32 %v437, %v437
    %v495 = vmul.f32 %v440, %v440
    %v496 = vmul.f32 %v442, %v442
    %v497 = vmul.f32 %v445, %v445
    %v498 = vmul.f32 %v447, %v447
    %v499 = vmul.f32 %v450, %v450
    %v500 = vmul.f32 %v452, %v452
    %v501 = vmul.f32 %v455, %v455
    %v502 = vmul.f32 %v457, %v457
    %v503 = vmul.f32 %v460, %v460
    %v504 = vmul.f32 %v462, %v462
    %v505 = vmul.f32 %v465, %v465
    %v506 = vmul.f32 %v467, %v467
    %v507 = vadd.f32 %v491, %v492
    %v508 = vadd.f32 %v507, %v493
    %v509 = vadd.f32 %v508, %v494
    %v510 = vadd.f32 %v509, %v495
    %v511 = vadd.f32 %v510, %v496
    %v512 = vadd.f32 %v511, %v497
    %v513 = vadd.f32 %v512, %v498
    %v514 = vadd.f32 %v513, %v499
    %v515 = vadd.f32 %v514, %v500
    %v516 = vadd.f32 %v515, %v501
    %v517 = vadd.f32 %v516, %v502
    %v518 = vadd.f32 %v517, %v503
    %v519 = vadd.f32 %v518, %v504
    %v520 = vadd.f32 %v519, %v505
    %v521 = vadd.f32 %v520, %v506
    %v522 = vrot.slane %v521, 4
    %v523 = vadd.f32 %v521, %v522
    %v524 = vrot.slane %v523, 2
    %v525 = vadd.f32 %v523, %v524
    %v526 = vrot.slane %v525, 1
    %v527 = vadd.f32 %v525, %v526
    %v528 = vmul.f32 %v527, %v230
    %v529 = vmul.f32 %v490, %v490
    %v530 = vsub.f32 %v528, %v529
    %v531 = vmax.f32 %v530, 0.0
    %v532 = vadd.f32 %v531, 1e-05
    %v533 = vrsqrt.pop %v532
    %v534 = vmul.f32 %v533, %v532
    %v535 = vmul.f32 %v534, %v533
    %v536 = vmul.f32 0.5, %v535
    %v537 = vsub.f32 1.5, %v536
    %v538 = vmul.f32 %v533, %v537
    %vm539 = vweird.f32 %v532
    %vm540 = vweird.f32 %v533
    %vm541 = vmor %vm539, %vm540
    %v542 = vsel %vm541, %v533, %v538
    %v543 = vmul.f32 %v70, %v542
    %v544 = vmul.f32 %v490, %v543
    %v546 = vrot.slane %v544, 7
    %v548 = vsub.f32 %v70, %v546
    %v549 = vperm.slane %v543, 2
    %v550 = vmul.f32 %v430, %v549
    %v551 = vmul.f32 %v432, %v549
    %v552 = vmul.f32 %v435, %v549
    %v553 = vmul.f32 %v437, %v549
    %v554 = vmul.f32 %v440, %v549
    %v555 = vmul.f32 %v442, %v549
    %v556 = vmul.f32 %v445, %v549
    %v557 = vmul.f32 %v447, %v549
    %v558 = vmul.f32 %v450, %v549
    %v559 = vmul.f32 %v452, %v549
    %v560 = vmul.f32 %v455, %v549
    %v561 = vmul.f32 %v457, %v549
    %v562 = vmul.f32 %v460, %v549
    %v563 = vmul.f32 %v462, %v549
    %v564 = vmul.f32 %v465, %v549
    %v565 = vmul.f32 %v467, %v549
    %v566 = vperm.slane %v548, 3
    %v567 = vadd.f32 %v550, %v566
    %v568 = vadd.f32 %v551, %v566
    %v569 = vadd.f32 %v552, %v566
    %v570 = vadd.f32 %v553, %v566
    %v571 = vadd.f32 %v554, %v566
    %v572 = vadd.f32 %v555, %v566
    %v573 = vadd.f32 %v556, %v566
    %v574 = vadd.f32 %v557, %v566
    %v575 = vadd.f32 %v558, %v566
    %v576 = vadd.f32 %v559, %v566
    %v577 = vadd.f32 %v560, %v566
    %v578 = vadd.f32 %v561, %v566
    %v579 = vadd.f32 %v562, %v566
    %v580 = vadd.f32 %v563, %v566
    %v581 = vadd.f32 %v564, %v566
    %v582 = vadd.f32 %v565, %v566
    %v583 = vmax.f32 %v567, 0.0
    %v584 = vmax.f32 %v568, 0.0
    %v585 = vmax.f32 %v569, 0.0
    %v586 = vmax.f32 %v570, 0.0
    %v587 = vmax.f32 %v571, 0.0
    %v588 = vmax.f32 %v572, 0.0
    %v589 = vmax.f32 %v573, 0.0
    %v590 = vmax.f32 %v574, 0.0
    %v591 = vmax.f32 %v575, 0.0
    %v592 = vmax.f32 %v576, 0.0
    %v593 = vmax.f32 %v577, 0.0
    %v594 = vmax.f32 %v578, 0.0
    %v595 = vmax.f32 %v579, 0.0
    %v596 = vmax.f32 %v580, 0.0
    %v597 = vmax.f32 %v581, 0.0
    %v598 = vmax.f32 %v582, 0.0
    %v599 = vpack.c.bf16 %v584, %v583
    %v600 = vpack.c.bf16 %v586, %v585
    %v601 = vpack.c.bf16 %v588, %v587
    %v602 = vpack.c.bf16 %v590, %v589
    %v603 = vpack.c.bf16 %v592, %v591
    %v604 = vpack.c.bf16 %v594, %v593
    %v605 = vpack.c.bf16 %v596, %v595
    %v606 = vpack.c.bf16 %v598, %v597
    %v607 = vld [vmem:[%s3] sm:$0xff]
    %v608 = vld [vmem:[%s3 + $0x8] sm:$0xff]
    %v609 = vld [vmem:[%s3 + $0x10] sm:$0xff]
    %v610 = vld [vmem:[%s3 + $0x18] sm:$0xff]
    %v611 = vld [vmem:[%s3 + $0x20] sm:$0xff]
    %v612 = vld [vmem:[%s3 + $0x28] sm:$0xff]
    %v613 = vld [vmem:[%s3 + $0x30] sm:$0xff]
    %v614 = vld [vmem:[%s3 + $0x38] sm:$0xff]
    %v615 = vld [vmem:[%s3 + $0x40] sm:$0xff]
    %v616 = vld [vmem:[%s3 + $0x48] sm:$0xff]
    %v617 = vld [vmem:[%s3 + $0x50] sm:$0xff]
    %v618 = vld [vmem:[%s3 + $0x58] sm:$0xff]
    %v619 = vld [vmem:[%s3 + $0x60] sm:$0xff]
    %v620 = vld [vmem:[%s3 + $0x68] sm:$0xff]
    %v621 = vld [vmem:[%s3 + $0x70] sm:$0xff]
    %v622 = vld [vmem:[%s3 + $0x78] sm:$0xff]
    %v639 = vunpack.c.l.b16 %v607
    %v640 = vunpack.c.h.b16 %v607
    %v641 = vunpack.c.l.b16 %v608
    %v642 = vunpack.c.h.b16 %v608
    %v643 = vunpack.c.l.b16 %v609
    %v644 = vunpack.c.h.b16 %v609
    %v645 = vunpack.c.l.b16 %v610
    %v646 = vunpack.c.h.b16 %v610
    %v647 = vunpack.c.l.b16 %v611
    %v648 = vunpack.c.h.b16 %v611
    %v649 = vunpack.c.l.b16 %v612
    %v650 = vunpack.c.h.b16 %v612
    %v651 = vunpack.c.l.b16 %v613
    %v652 = vunpack.c.h.b16 %v613
    %v653 = vunpack.c.l.b16 %v614
    %v654 = vunpack.c.h.b16 %v614
    %v655 = vunpack.c.l.b16 %v615
    %v656 = vunpack.c.h.b16 %v615
    %v657 = vunpack.c.l.b16 %v616
    %v658 = vunpack.c.h.b16 %v616
    %v659 = vunpack.c.l.b16 %v617
    %v660 = vunpack.c.h.b16 %v617
    %v661 = vunpack.c.l.b16 %v618
    %v662 = vunpack.c.h.b16 %v618
    %v663 = vunpack.c.l.b16 %v619
    %v664 = vunpack.c.h.b16 %v619
    %v665 = vunpack.c.l.b16 %v620
    %v666 = vunpack.c.h.b16 %v620
    %v667 = vunpack.c.l.b16 %v621
    %v668 = vunpack.c.h.b16 %v621
    %v669 = vunpack.c.l.b16 %v622
    %v670 = vunpack.c.h.b16 %v622
    %v671 = vpack.c.b16 %v641, %v639
    %v672 = vpack.c.b16 %v642, %v640
    %v673 = vpack.c.b16 %v645, %v643
    %v674 = vpack.c.b16 %v646, %v644
    %v675 = vpack.c.b16 %v649, %v647
    %v676 = vpack.c.b16 %v650, %v648
    %v677 = vpack.c.b16 %v653, %v651
    %v678 = vpack.c.b16 %v654, %v652
    %v679 = vpack.c.b16 %v657, %v655
    %v680 = vpack.c.b16 %v658, %v656
    %v681 = vpack.c.b16 %v661, %v659
    %v682 = vpack.c.b16 %v662, %v660
    %v683 = vpack.c.b16 %v665, %v663
    %v684 = vpack.c.b16 %v666, %v664
    %v685 = vpack.c.b16 %v669, %v667
    %v686 = vpack.c.b16 %v670, %v668
    %703 = vmatpush.bf16.msra.mxu0 %v685
    %704 = vmatpush.bf16.msra.mxu0 %v683
    %705 = vmatpush.bf16.msra.mxu0 %v681
    %706 = vmatpush.bf16.msra.mxu0 %v679
    %707 = vmatpush.bf16.msra.mxu0 %v677
    %708 = vmatpush.bf16.msra.mxu0 %v675
    %709 = vmatpush.bf16.msra.mxu0 %v673
    %710 = vmatpush.bf16.msra.mxu0 %v671
    %711 = vmatmul.bf16.gmra.mxu0 %v599
    %v712 = vpop.f32.mrf.mxu0
    %v713 = vadd.f32 0.0, %v712
    %v714 = vpop.f32.mrf.mxu0
    %v715 = vadd.f32 0.0, %v714
    %716 = vmatmul.bf16.gmra.mxu0 %v600
    %v717 = vpop.f32.mrf.mxu0
    %v718 = vadd.f32 0.0, %v717
    %v719 = vpop.f32.mrf.mxu0
    %v720 = vadd.f32 0.0, %v719
    %721 = vmatmul.bf16.gmra.mxu0 %v601
    %v722 = vpop.f32.mrf.mxu0
    %v723 = vadd.f32 0.0, %v722
    %v724 = vpop.f32.mrf.mxu0
    %v725 = vadd.f32 0.0, %v724
    %726 = vmatmul.bf16.gmra.mxu0 %v602
    %v727 = vpop.f32.mrf.mxu0
    %v728 = vadd.f32 0.0, %v727
    %v729 = vpop.f32.mrf.mxu0
    %v730 = vadd.f32 0.0, %v729
    %731 = vmatmul.bf16.gmra.mxu0 %v603
    %v732 = vpop.f32.mrf.mxu0
    %v733 = vadd.f32 0.0, %v732
    %v734 = vpop.f32.mrf.mxu0
    %v735 = vadd.f32 0.0, %v734
    %736 = vmatmul.bf16.gmra.mxu0 %v604
    %v737 = vpop.f32.mrf.mxu0
    %v738 = vadd.f32 0.0, %v737
    %v739 = vpop.f32.mrf.mxu0
    %v740 = vadd.f32 0.0, %v739
    %741 = vmatmul.bf16.gmra.mxu0 %v605
    %v742 = vpop.f32.mrf.mxu0
    %v743 = vadd.f32 0.0, %v742
    %v744 = vpop.f32.mrf.mxu0
    %v745 = vadd.f32 0.0, %v744
    %746 = vmatmul.bf16.gmra.mxu0 %v606
    %v747 = vpop.f32.mrf.mxu0
    %v748 = vadd.f32 0.0, %v747
    %v749 = vpop.f32.mrf.mxu0
    %v750 = vadd.f32 0.0, %v749
    %751 = vdwg.mxu0
    %752 = vmatpush.bf16.msra.mxu0 %v686
    %753 = vmatpush.bf16.msra.mxu0 %v684
    %754 = vmatpush.bf16.msra.mxu0 %v682
    %755 = vmatpush.bf16.msra.mxu0 %v680
    %756 = vmatpush.bf16.msra.mxu0 %v678
    %757 = vmatpush.bf16.msra.mxu0 %v676
    %758 = vmatpush.bf16.msra.mxu0 %v674
    %759 = vmatpush.bf16.msra.mxu0 %v672
    %760 = vmatmul.bf16.gmra.mxu0 %v599
    %v761 = vpop.f32.mrf.mxu0
    %v762 = vadd.f32 0.0, %v761
    %v763 = vpop.f32.mrf.mxu0
    %v764 = vadd.f32 0.0, %v763
    %765 = vmatmul.bf16.gmra.mxu0 %v600
    %v766 = vpop.f32.mrf.mxu0
    %v767 = vadd.f32 0.0, %v766
    %v768 = vpop.f32.mrf.mxu0
    %v769 = vadd.f32 0.0, %v768
    %770 = vmatmul.bf16.gmra.mxu0 %v601
    %v771 = vpop.f32.mrf.mxu0
    %v772 = vadd.f32 0.0, %v771
    %v773 = vpop.f32.mrf.mxu0
    %v774 = vadd.f32 0.0, %v773
    %775 = vmatmul.bf16.gmra.mxu0 %v602
    %v776 = vpop.f32.mrf.mxu0
    %v777 = vadd.f32 0.0, %v776
    %v778 = vpop.f32.mrf.mxu0
    %v779 = vadd.f32 0.0, %v778
    %780 = vmatmul.bf16.gmra.mxu0 %v603
    %v781 = vpop.f32.mrf.mxu0
    %v782 = vadd.f32 0.0, %v781
    %v783 = vpop.f32.mrf.mxu0
    %v784 = vadd.f32 0.0, %v783
    %785 = vmatmul.bf16.gmra.mxu0 %v604
    %v786 = vpop.f32.mrf.mxu0
    %v787 = vadd.f32 0.0, %v786
    %v788 = vpop.f32.mrf.mxu0
    %v789 = vadd.f32 0.0, %v788
    %790 = vmatmul.bf16.gmra.mxu0 %v605
    %v791 = vpop.f32.mrf.mxu0
    %v792 = vadd.f32 0.0, %v791
    %v793 = vpop.f32.mrf.mxu0
    %v794 = vadd.f32 0.0, %v793
    %795 = vmatmul.bf16.gmra.mxu0 %v606
    %v796 = vpop.f32.mrf.mxu0
    %v797 = vadd.f32 0.0, %v796
    %v798 = vpop.f32.mrf.mxu0
    %v799 = vadd.f32 0.0, %v798
    %800 = vdwg.mxu0
    %v801 = vadd.f32 %v713, %v715
    %v802 = vadd.f32 %v801, %v718
    %v803 = vadd.f32 %v802, %v720
    %v804 = vadd.f32 %v803, %v723
    %v805 = vadd.f32 %v804, %v725
    %v806 = vadd.f32 %v805, %v728
    %v807 = vadd.f32 %v806, %v730
    %v808 = vadd.f32 %v807, %v733
    %v809 = vadd.f32 %v808, %v735
    %v810 = vadd.f32 %v809, %v738
    %v811 = vadd.f32 %v810, %v740
    %v812 = vadd.f32 %v811, %v743
    %v813 = vadd.f32 %v812, %v745
    %v814 = vadd.f32 %v813, %v748
    %v815 = vadd.f32 %v814, %v750
    %v816 = vrot.slane %v815, 4
    %v817 = vadd.f32 %v815, %v816
    %v818 = vrot.slane %v817, 2
    %v819 = vadd.f32 %v817, %v818
    %v820 = vrot.slane %v819, 1
    %v821 = vadd.f32 %v819, %v820
    %v822 = vadd.f32 %v762, %v764
    %v823 = vadd.f32 %v822, %v767
    %v824 = vadd.f32 %v823, %v769
    %v825 = vadd.f32 %v824, %v772
    %v826 = vadd.f32 %v825, %v774
    %v827 = vadd.f32 %v826, %v777
    %v828 = vadd.f32 %v827, %v779
    %v829 = vadd.f32 %v828, %v782
    %v830 = vadd.f32 %v829, %v784
    %v831 = vadd.f32 %v830, %v787
    %v832 = vadd.f32 %v831, %v789
    %v833 = vadd.f32 %v832, %v792
    %v834 = vadd.f32 %v833, %v794
    %v835 = vadd.f32 %v834, %v797
    %v836 = vadd.f32 %v835, %v799
    %v837 = vrot.slane %v836, 4
    %v838 = vadd.f32 %v836, %v837
    %v839 = vrot.slane %v838, 2
    %v840 = vadd.f32 %v838, %v839
    %v841 = vrot.slane %v840, 1
    %v842 = vadd.f32 %v840, %v841
    %v843 = vmul.f32 %v821, %v230
    %v844 = vmul.f32 %v842, %v230
    %v845 = vmul.f32 %v713, %v713
    %v846 = vmul.f32 %v762, %v762
    %v847 = vmul.f32 %v715, %v715
    %v848 = vmul.f32 %v764, %v764
    %v849 = vmul.f32 %v718, %v718
    %v850 = vmul.f32 %v767, %v767
    %v851 = vmul.f32 %v720, %v720
    %v852 = vmul.f32 %v769, %v769
    %v853 = vmul.f32 %v723, %v723
    %v854 = vmul.f32 %v772, %v772
    %v855 = vmul.f32 %v725, %v725
    %v856 = vmul.f32 %v774, %v774
    %v857 = vmul.f32 %v728, %v728
    %v858 = vmul.f32 %v777, %v777
    %v859 = vmul.f32 %v730, %v730
    %v860 = vmul.f32 %v779, %v779
    %v861 = vmul.f32 %v733, %v733
    %v862 = vmul.f32 %v782, %v782
    %v863 = vmul.f32 %v735, %v735
    %v864 = vmul.f32 %v784, %v784
    %v865 = vmul.f32 %v738, %v738
    %v866 = vmul.f32 %v787, %v787
    %v867 = vmul.f32 %v740, %v740
    %v868 = vmul.f32 %v789, %v789
    %v869 = vmul.f32 %v743, %v743
    %v870 = vmul.f32 %v792, %v792
    %v871 = vmul.f32 %v745, %v745
    %v872 = vmul.f32 %v794, %v794
    %v873 = vmul.f32 %v748, %v748
    %v874 = vmul.f32 %v797, %v797
    %v875 = vmul.f32 %v750, %v750
    %v876 = vmul.f32 %v799, %v799
    %v877 = vadd.f32 %v845, %v847
    %v878 = vadd.f32 %v877, %v849
    %v879 = vadd.f32 %v878, %v851
    %v880 = vadd.f32 %v879, %v853
    %v881 = vadd.f32 %v880, %v855
    %v882 = vadd.f32 %v881, %v857
    %v883 = vadd.f32 %v882, %v859
    %v884 = vadd.f32 %v883, %v861
    %v885 = vadd.f32 %v884, %v863
    %v886 = vadd.f32 %v885, %v865
    %v887 = vadd.f32 %v886, %v867
    %v888 = vadd.f32 %v887, %v869
    %v889 = vadd.f32 %v888, %v871
    %v890 = vadd.f32 %v889, %v873
    %v891 = vadd.f32 %v890, %v875
    %v892 = vrot.slane %v891, 4
    %v893 = vadd.f32 %v891, %v892
    %v894 = vrot.slane %v893, 2
    %v895 = vadd.f32 %v893, %v894
    %v896 = vrot.slane %v895, 1
    %v897 = vadd.f32 %v895, %v896
    %v898 = vadd.f32 %v846, %v848
    %v899 = vadd.f32 %v898, %v850
    %v900 = vadd.f32 %v899, %v852
    %v901 = vadd.f32 %v900, %v854
    %v902 = vadd.f32 %v901, %v856
    %v903 = vadd.f32 %v902, %v858
    %v904 = vadd.f32 %v903, %v860
    %v905 = vadd.f32 %v904, %v862
    %v906 = vadd.f32 %v905, %v864
    %v907 = vadd.f32 %v906, %v866
    %v908 = vadd.f32 %v907, %v868
    %v909 = vadd.f32 %v908, %v870
    %v910 = vadd.f32 %v909, %v872
    %v911 = vadd.f32 %v910, %v874
    %v912 = vadd.f32 %v911, %v876
    %v913 = vrot.slane %v912, 4
    %v914 = vadd.f32 %v912, %v913
    %v915 = vrot.slane %v914, 2
    %v916 = vadd.f32 %v914, %v915
    %v917 = vrot.slane %v916, 1
    %v918 = vadd.f32 %v916, %v917
    %v919 = vmul.f32 %v897, %v230
    %v920 = vmul.f32 %v918, %v230
    %v921 = vmul.f32 %v843, %v843
    %v922 = vmul.f32 %v844, %v844
    %v923 = vsub.f32 %v919, %v921
    %v924 = vsub.f32 %v920, %v922
    %v925 = vmax.f32 %v923, 0.0
    %v926 = vmax.f32 %v924, 0.0
    %v927 = vadd.f32 %v925, 1e-05
    %v928 = vadd.f32 %v926, 1e-05
    %v929 = vrsqrt.pop %v927
    %v930 = vmul.f32 %v929, %v927
    %v931 = vmul.f32 %v930, %v929
    %v932 = vmul.f32 0.5, %v931
    %v933 = vsub.f32 1.5, %v932
    %v934 = vmul.f32 %v929, %v933
    %vm935 = vweird.f32 %v927
    %vm936 = vweird.f32 %v929
    %vm937 = vmor %vm935, %vm936
    %v938 = vsel %vm937, %v929, %v934
    %v939 = vrsqrt.pop %v928
    %v940 = vmul.f32 %v939, %v928
    %v941 = vmul.f32 %v940, %v939
    %v942 = vmul.f32 0.5, %v941
    %v943 = vsub.f32 1.5, %v942
    %v944 = vmul.f32 %v939, %v943
    %vm945 = vweird.f32 %v928
    %vm946 = vweird.f32 %v939
    %vm947 = vmor %vm945, %vm946
    %v948 = vsel %vm947, %v939, %v944
    %v949 = vmul.f32 %v70, %v938
    %v950 = vmul.f32 %v71, %v948
    %v951 = vmul.f32 %v843, %v949
    %v952 = vmul.f32 %v844, %v950
    %v955 = vrot.slane %v951, 7
    %v956 = vrot.slane %v952, 7
    %v959 = vsub.f32 %v70, %v955
    %v960 = vsub.f32 %v71, %v956
    %v961 = vperm.slane %v949, 4
    %v962 = vperm.slane %v950, 4
    %v963 = vmul.f32 %v713, %v961
    %v964 = vmul.f32 %v762, %v962
    %v965 = vmul.f32 %v715, %v961
    %v966 = vmul.f32 %v764, %v962
    %v967 = vmul.f32 %v718, %v961
    %v968 = vmul.f32 %v767, %v962
    %v969 = vmul.f32 %v720, %v961
    %v970 = vmul.f32 %v769, %v962
    %v971 = vmul.f32 %v723, %v961
    %v972 = vmul.f32 %v772, %v962
    %v973 = vmul.f32 %v725, %v961
    %v974 = vmul.f32 %v774, %v962
    %v975 = vmul.f32 %v728, %v961
    %v976 = vmul.f32 %v777, %v962
    %v977 = vmul.f32 %v730, %v961
    %v978 = vmul.f32 %v779, %v962
    %v979 = vmul.f32 %v733, %v961
    %v980 = vmul.f32 %v782, %v962
    %v981 = vmul.f32 %v735, %v961
    %v982 = vmul.f32 %v784, %v962
    %v983 = vmul.f32 %v738, %v961
    %v984 = vmul.f32 %v787, %v962
    %v985 = vmul.f32 %v740, %v961
    %v986 = vmul.f32 %v789, %v962
    %v987 = vmul.f32 %v743, %v961
    %v988 = vmul.f32 %v792, %v962
    %v989 = vmul.f32 %v745, %v961
    %v990 = vmul.f32 %v794, %v962
    %v991 = vmul.f32 %v748, %v961
    %v992 = vmul.f32 %v797, %v962
    %v993 = vmul.f32 %v750, %v961
    %v994 = vmul.f32 %v799, %v962
    %v995 = vperm.slane %v959, 5
    %v996 = vperm.slane %v960, 5
    %v997 = vadd.f32 %v963, %v995
    %v998 = vadd.f32 %v964, %v996
    %v999 = vadd.f32 %v965, %v995
    %v1000 = vadd.f32 %v966, %v996
    %v1001 = vadd.f32 %v967, %v995
    %v1002 = vadd.f32 %v968, %v996
    %v1003 = vadd.f32 %v969, %v995
    %v1004 = vadd.f32 %v970, %v996
    %v1005 = vadd.f32 %v971, %v995
    %v1006 = vadd.f32 %v972, %v996
    %v1007 = vadd.f32 %v973, %v995
    %v1008 = vadd.f32 %v974, %v996
    %v1009 = vadd.f32 %v975, %v995
    %v1010 = vadd.f32 %v976, %v996
    %v1011 = vadd.f32 %v977, %v995
    %v1012 = vadd.f32 %v978, %v996
    %v1013 = vadd.f32 %v979, %v995
    %v1014 = vadd.f32 %v980, %v996
    %v1015 = vadd.f32 %v981, %v995
    %v1016 = vadd.f32 %v982, %v996
    %v1017 = vadd.f32 %v983, %v995
    %v1018 = vadd.f32 %v984, %v996
    %v1019 = vadd.f32 %v985, %v995
    %v1020 = vadd.f32 %v986, %v996
    %v1021 = vadd.f32 %v987, %v995
    %v1022 = vadd.f32 %v988, %v996
    %v1023 = vadd.f32 %v989, %v995
    %v1024 = vadd.f32 %v990, %v996
    %v1025 = vadd.f32 %v991, %v995
    %v1026 = vadd.f32 %v992, %v996
    %v1027 = vadd.f32 %v993, %v995
    %v1028 = vadd.f32 %v994, %v996
    %v1029 = vmax.f32 %v997, 0.0
    %v1030 = vmax.f32 %v998, 0.0
    %v1031 = vmax.f32 %v999, 0.0
    %v1032 = vmax.f32 %v1000, 0.0
    %v1033 = vmax.f32 %v1001, 0.0
    %v1034 = vmax.f32 %v1002, 0.0
    %v1035 = vmax.f32 %v1003, 0.0
    %v1036 = vmax.f32 %v1004, 0.0
    %v1037 = vmax.f32 %v1005, 0.0
    %v1038 = vmax.f32 %v1006, 0.0
    %v1039 = vmax.f32 %v1007, 0.0
    %v1040 = vmax.f32 %v1008, 0.0
    %v1041 = vmax.f32 %v1009, 0.0
    %v1042 = vmax.f32 %v1010, 0.0
    %v1043 = vmax.f32 %v1011, 0.0
    %v1044 = vmax.f32 %v1012, 0.0
    %v1045 = vmax.f32 %v1013, 0.0
    %v1046 = vmax.f32 %v1014, 0.0
    %v1047 = vmax.f32 %v1015, 0.0
    %v1048 = vmax.f32 %v1016, 0.0
    %v1049 = vmax.f32 %v1017, 0.0
    %v1050 = vmax.f32 %v1018, 0.0
    %v1051 = vmax.f32 %v1019, 0.0
    %v1052 = vmax.f32 %v1020, 0.0
    %v1053 = vmax.f32 %v1021, 0.0
    %v1054 = vmax.f32 %v1022, 0.0
    %v1055 = vmax.f32 %v1023, 0.0
    %v1056 = vmax.f32 %v1024, 0.0
    %v1057 = vmax.f32 %v1025, 0.0
    %v1058 = vmax.f32 %v1026, 0.0
    %v1059 = vmax.f32 %v1027, 0.0
    %v1060 = vmax.f32 %v1028, 0.0
    %v1061 = vpack.c.bf16 %v1031, %v1029
    %v1062 = vpack.c.bf16 %v1032, %v1030
    %v1063 = vpack.c.bf16 %v1035, %v1033
    %v1064 = vpack.c.bf16 %v1036, %v1034
    %v1065 = vpack.c.bf16 %v1039, %v1037
    %v1066 = vpack.c.bf16 %v1040, %v1038
    %v1067 = vpack.c.bf16 %v1043, %v1041
    %v1068 = vpack.c.bf16 %v1044, %v1042
    %v1069 = vpack.c.bf16 %v1047, %v1045
    %v1070 = vpack.c.bf16 %v1048, %v1046
    %v1071 = vpack.c.bf16 %v1051, %v1049
    %v1072 = vpack.c.bf16 %v1052, %v1050
    %v1073 = vpack.c.bf16 %v1055, %v1053
    %v1074 = vpack.c.bf16 %v1056, %v1054
    %v1075 = vpack.c.bf16 %v1059, %v1057
    %v1076 = vpack.c.bf16 %v1060, %v1058
    %v1077 = vld [vmem:[#allocation5] sm:$0xff]
    %v1078 = vld [vmem:[#allocation5 + $0x8] sm:$0xff]
    %v1079 = vld [vmem:[#allocation5 + $0x10] sm:$0xff]
    %v1080 = vld [vmem:[#allocation5 + $0x18] sm:$0xf]
    %v1081 = vld [vmem:[#allocation5 + $0x1c] sm:$0xff]
    %v1082 = vld [vmem:[#allocation5 + $0x24] sm:$0xff]
    %v1083 = vld [vmem:[#allocation5 + $0x2c] sm:$0xff]
    %v1084 = vld [vmem:[#allocation5 + $0x34] sm:$0xf]
    %v1085 = vld [vmem:[#allocation5 + $0x38] sm:$0xff]
    %v1086 = vld [vmem:[#allocation5 + $0x40] sm:$0xff]
    %v1087 = vld [vmem:[#allocation5 + $0x48] sm:$0xff]
    %v1088 = vld [vmem:[#allocation5 + $0x50] sm:$0xf]
    %v1089 = vld [vmem:[#allocation5 + $0x54] sm:$0xff]
    %v1090 = vld [vmem:[#allocation5 + $0x5c] sm:$0xff]
    %v1091 = vld [vmem:[#allocation5 + $0x64] sm:$0xff]
    %v1092 = vld [vmem:[#allocation5 + $0x6c] sm:$0xf]
    %v1093 = vld [vmem:[#allocation5 + $0x70] sm:$0xff]
    %v1094 = vld [vmem:[#allocation5 + $0x78] sm:$0xff]
    %v1095 = vld [vmem:[#allocation5 + $0x80] sm:$0xff]
    %v1096 = vld [vmem:[#allocation5 + $0x88] sm:$0xf]
    %v1097 = vld [vmem:[#allocation5 + $0x8c] sm:$0xff]
    %v1098 = vld [vmem:[#allocation5 + $0x94] sm:$0xff]
    %v1099 = vld [vmem:[#allocation5 + $0x9c] sm:$0xff]
    %v1100 = vld [vmem:[#allocation5 + $0xa4] sm:$0xf]
    %v1101 = vld [vmem:[#allocation5 + $0xa8] sm:$0xff]
    %v1102 = vld [vmem:[#allocation5 + $0xb0] sm:$0xff]
    %v1103 = vld [vmem:[#allocation5 + $0xb8] sm:$0xff]
    %v1104 = vld [vmem:[#allocation5 + $0xc0] sm:$0xf]
    %v1105 = vld [vmem:[#allocation5 + $0xc4] sm:$0xff]
    %v1106 = vld [vmem:[#allocation5 + $0xcc] sm:$0xff]
    %v1107 = vld [vmem:[#allocation5 + $0xd4] sm:$0xff]
    %v1108 = vld [vmem:[#allocation5 + $0xdc] sm:$0xf]
    %v1109 = vld [vmem:[#allocation5 + $0xe0] sm:$0xff]
    %v1110 = vld [vmem:[#allocation5 + $0xe8] sm:$0xff]
    %v1111 = vld [vmem:[#allocation5 + $0xf0] sm:$0xff]
    %v1112 = vld [vmem:[#allocation5 + $0xf8] sm:$0xf]
    %v1113 = vld [vmem:[#allocation5 + $0xfc] sm:$0xff]
    %v1114 = vld [vmem:[#allocation5 + $0x104] sm:$0xff]
    %v1115 = vld [vmem:[#allocation5 + $0x10c] sm:$0xff]
    %v1116 = vld [vmem:[#allocation5 + $0x114] sm:$0xf]
    %v1117 = vld [vmem:[#allocation5 + $0x118] sm:$0xff]
    %v1118 = vld [vmem:[#allocation5 + $0x120] sm:$0xff]
    %v1119 = vld [vmem:[#allocation5 + $0x128] sm:$0xff]
    %v1120 = vld [vmem:[#allocation5 + $0x130] sm:$0xf]
    %v1121 = vld [vmem:[#allocation5 + $0x134] sm:$0xff]
    %v1122 = vld [vmem:[#allocation5 + $0x13c] sm:$0xff]
    %v1123 = vld [vmem:[#allocation5 + $0x144] sm:$0xff]
    %v1124 = vld [vmem:[#allocation5 + $0x14c] sm:$0xf]
    %v1125 = vld [vmem:[#allocation5 + $0x150] sm:$0xff]
    %v1126 = vld [vmem:[#allocation5 + $0x158] sm:$0xff]
    %v1127 = vld [vmem:[#allocation5 + $0x160] sm:$0xff]
    %v1128 = vld [vmem:[#allocation5 + $0x168] sm:$0xf]
    %v1129 = vld [vmem:[#allocation5 + $0x16c] sm:$0xff]
    %v1130 = vld [vmem:[#allocation5 + $0x174] sm:$0xff]
    %v1131 = vld [vmem:[#allocation5 + $0x17c] sm:$0xff]
    %v1132 = vld [vmem:[#allocation5 + $0x184] sm:$0xf]
    %v1133 = vld [vmem:[#allocation5 + $0x188] sm:$0xff]
    %v1134 = vld [vmem:[#allocation5 + $0x190] sm:$0xff]
    %v1135 = vld [vmem:[#allocation5 + $0x198] sm:$0xff]
    %v1136 = vld [vmem:[#allocation5 + $0x1a0] sm:$0xf]
    %v1137 = vld [vmem:[#allocation5 + $0x1a4] sm:$0xff]
    %v1138 = vld [vmem:[#allocation5 + $0x1ac] sm:$0xff]
    %v1139 = vld [vmem:[#allocation5 + $0x1b4] sm:$0xff]
    %v1140 = vld [vmem:[#allocation5 + $0x1bc] sm:$0xf]
    %v1141 = vld [vmem:[#allocation5 + $0x1c0] sm:$0xff]
    %v1142 = vld [vmem:[#allocation5 + $0x1c8] sm:$0xff]
    %v1143 = vld [vmem:[#allocation5 + $0x1d0] sm:$0xff]
    %v1144 = vld [vmem:[#allocation5 + $0x1d8] sm:$0xf]
    %v1145 = vld [vmem:[#allocation5 + $0x1dc] sm:$0xff]
    %v1146 = vld [vmem:[#allocation5 + $0x1e4] sm:$0xff]
    %v1147 = vld [vmem:[#allocation5 + $0x1ec] sm:$0xff]
    %v1148 = vld [vmem:[#allocation5 + $0x1f4] sm:$0xf]
    %v1149 = vld [vmem:[#allocation5 + $0x1f8] sm:$0xff]
    %v1150 = vld [vmem:[#allocation5 + $0x200] sm:$0xff]
    %v1151 = vld [vmem:[#allocation5 + $0x208] sm:$0xff]
    %v1152 = vld [vmem:[#allocation5 + $0x210] sm:$0xf]
    %v1153 = vld [vmem:[#allocation5 + $0x214] sm:$0xff]
    %v1154 = vld [vmem:[#allocation5 + $0x21c] sm:$0xff]
    %v1155 = vld [vmem:[#allocation5 + $0x224] sm:$0xff]
    %v1156 = vld [vmem:[#allocation5 + $0x22c] sm:$0xf]
    %v1157 = vld [vmem:[#allocation5 + $0x230] sm:$0xff]
    %v1158 = vld [vmem:[#allocation5 + $0x238] sm:$0xff]
    %v1159 = vld [vmem:[#allocation5 + $0x240] sm:$0xff]
    %v1160 = vld [vmem:[#allocation5 + $0x248] sm:$0xf]
    %v1161 = vld [vmem:[#allocation5 + $0x24c] sm:$0xff]
    %v1162 = vld [vmem:[#allocation5 + $0x254] sm:$0xff]
    %v1163 = vld [vmem:[#allocation5 + $0x25c] sm:$0xff]
    %v1164 = vld [vmem:[#allocation5 + $0x264] sm:$0xf]
    %v1165 = vld [vmem:[#allocation5 + $0x268] sm:$0xff]
    %v1166 = vld [vmem:[#allocation5 + $0x270] sm:$0xff]
    %v1167 = vld [vmem:[#allocation5 + $0x278] sm:$0xff]
    %v1168 = vld [vmem:[#allocation5 + $0x280] sm:$0xf]
    %v1169 = vld [vmem:[#allocation5 + $0x284] sm:$0xff]
    %v1170 = vld [vmem:[#allocation5 + $0x28c] sm:$0xff]
    %v1171 = vld [vmem:[#allocation5 + $0x294] sm:$0xff]
    %v1172 = vld [vmem:[#allocation5 + $0x29c] sm:$0xf]
    %v1173 = vld [vmem:[#allocation5 + $0x2a0] sm:$0xff]
    %v1174 = vld [vmem:[#allocation5 + $0x2a8] sm:$0xff]
    %v1175 = vld [vmem:[#allocation5 + $0x2b0] sm:$0xff]
    %v1176 = vld [vmem:[#allocation5 + $0x2b8] sm:$0xf]
    %v1177 = vld [vmem:[#allocation5 + $0x2bc] sm:$0xff]
    %v1178 = vld [vmem:[#allocation5 + $0x2c4] sm:$0xff]
    %v1179 = vld [vmem:[#allocation5 + $0x2cc] sm:$0xff]
    %v1180 = vld [vmem:[#allocation5 + $0x2d4] sm:$0xf]
    %v1181 = vld [vmem:[#allocation5 + $0x2d8] sm:$0xff]
    %v1182 = vld [vmem:[#allocation5 + $0x2e0] sm:$0xff]
    %v1183 = vld [vmem:[#allocation5 + $0x2e8] sm:$0xff]
    %v1184 = vld [vmem:[#allocation5 + $0x2f0] sm:$0xf]
    %v1185 = vld [vmem:[#allocation5 + $0x2f4] sm:$0xff]
    %v1186 = vld [vmem:[#allocation5 + $0x2fc] sm:$0xff]
    %v1187 = vld [vmem:[#allocation5 + $0x304] sm:$0xff]
    %v1188 = vld [vmem:[#allocation5 + $0x30c] sm:$0xf]
    %v1189 = vld [vmem:[#allocation5 + $0x310] sm:$0xff]
    %v1190 = vld [vmem:[#allocation5 + $0x318] sm:$0xff]
    %v1191 = vld [vmem:[#allocation5 + $0x320] sm:$0xff]
    %v1192 = vld [vmem:[#allocation5 + $0x328] sm:$0xf]
    %v1193 = vld [vmem:[#allocation5 + $0x32c] sm:$0xff]
    %v1194 = vld [vmem:[#allocation5 + $0x334] sm:$0xff]
    %v1195 = vld [vmem:[#allocation5 + $0x33c] sm:$0xff]
    %v1196 = vld [vmem:[#allocation5 + $0x344] sm:$0xf]
    %v1197 = vld [vmem:[#allocation5 + $0x348] sm:$0xff]
    %v1198 = vld [vmem:[#allocation5 + $0x350] sm:$0xff]
    %v1199 = vld [vmem:[#allocation5 + $0x358] sm:$0xff]
    %v1200 = vld [vmem:[#allocation5 + $0x360] sm:$0xf]
    %v1201 = vld [vmem:[#allocation5 + $0x364] sm:$0xff]
    %v1202 = vld [vmem:[#allocation5 + $0x36c] sm:$0xff]
    %v1203 = vld [vmem:[#allocation5 + $0x374] sm:$0xff]
    %v1204 = vld [vmem:[#allocation5 + $0x37c] sm:$0xf]
    %v1205 = vperm.slane %v70, 6
    %v1206 = vperm.slane %v71, 6
    %v1207 = vperm.slane %v72, 6
    %v1208 = vperm.slane %v73, 6
    %v1209 = vperm.slane %v74, 6
    %v1210 = vperm.slane %v75, 6
    %v1211 = vperm.slane %v76, 6
    %v1340 = vunpack.c.l.b16 %v1077
    %v1341 = vunpack.c.h.b16 %v1077
    %v1342 = vunpack.c.l.b16 %v1078
    %v1343 = vunpack.c.h.b16 %v1078
    %v1344 = vunpack.c.l.b16 %v1079
    %v1345 = vunpack.c.h.b16 %v1079
    %v1346 = vunpack.c.l.b16 %v1080
    %v1347 = vunpack.c.l.b16 %v1081
    %v1348 = vunpack.c.h.b16 %v1081
    %v1349 = vunpack.c.l.b16 %v1082
    %v1350 = vunpack.c.h.b16 %v1082
    %v1351 = vunpack.c.l.b16 %v1083
    %v1352 = vunpack.c.h.b16 %v1083
    %v1353 = vunpack.c.l.b16 %v1084
    %v1354 = vunpack.c.l.b16 %v1085
    %v1355 = vunpack.c.h.b16 %v1085
    %v1356 = vunpack.c.l.b16 %v1086
    %v1357 = vunpack.c.h.b16 %v1086
    %v1358 = vunpack.c.l.b16 %v1087
    %v1359 = vunpack.c.h.b16 %v1087
    %v1360 = vunpack.c.l.b16 %v1088
    %v1361 = vunpack.c.l.b16 %v1089
    %v1362 = vunpack.c.h.b16 %v1089
    %v1363 = vunpack.c.l.b16 %v1090
    %v1364 = vunpack.c.h.b16 %v1090
    %v1365 = vunpack.c.l.b16 %v1091
    %v1366 = vunpack.c.h.b16 %v1091
    %v1367 = vunpack.c.l.b16 %v1092
    %v1368 = vunpack.c.l.b16 %v1093
    %v1369 = vunpack.c.h.b16 %v1093
    %v1370 = vunpack.c.l.b16 %v1094
    %v1371 = vunpack.c.h.b16 %v1094
    %v1372 = vunpack.c.l.b16 %v1095
    %v1373 = vunpack.c.h.b16 %v1095
    %v1374 = vunpack.c.l.b16 %v1096
    %v1375 = vunpack.c.l.b16 %v1097
    %v1376 = vunpack.c.h.b16 %v1097
    %v1377 = vunpack.c.l.b16 %v1098
    %v1378 = vunpack.c.h.b16 %v1098
    %v1379 = vunpack.c.l.b16 %v1099
    %v1380 = vunpack.c.h.b16 %v1099
    %v1381 = vunpack.c.l.b16 %v1100
    %v1382 = vunpack.c.l.b16 %v1101
    %v1383 = vunpack.c.h.b16 %v1101
    %v1384 = vunpack.c.l.b16 %v1102
    %v1385 = vunpack.c.h.b16 %v1102
    %v1386 = vunpack.c.l.b16 %v1103
    %v1387 = vunpack.c.h.b16 %v1103
    %v1388 = vunpack.c.l.b16 %v1104
    %v1389 = vunpack.c.l.b16 %v1105
    %v1390 = vunpack.c.h.b16 %v1105
    %v1391 = vunpack.c.l.b16 %v1106
    %v1392 = vunpack.c.h.b16 %v1106
    %v1393 = vunpack.c.l.b16 %v1107
    %v1394 = vunpack.c.h.b16 %v1107
    %v1395 = vunpack.c.l.b16 %v1108
    %v1396 = vunpack.c.l.b16 %v1109
    %v1397 = vunpack.c.h.b16 %v1109
    %v1398 = vunpack.c.l.b16 %v1110
    %v1399 = vunpack.c.h.b16 %v1110
    %v1400 = vunpack.c.l.b16 %v1111
    %v1401 = vunpack.c.h.b16 %v1111
    %v1402 = vunpack.c.l.b16 %v1112
    %v1403 = vunpack.c.l.b16 %v1113
    %v1404 = vunpack.c.h.b16 %v1113
    %v1405 = vunpack.c.l.b16 %v1114
    %v1406 = vunpack.c.h.b16 %v1114
    %v1407 = vunpack.c.l.b16 %v1115
    %v1408 = vunpack.c.h.b16 %v1115
    %v1409 = vunpack.c.l.b16 %v1116
    %v1410 = vunpack.c.l.b16 %v1117
    %v1411 = vunpack.c.h.b16 %v1117
    %v1412 = vunpack.c.l.b16 %v1118
    %v1413 = vunpack.c.h.b16 %v1118
    %v1414 = vunpack.c.l.b16 %v1119
    %v1415 = vunpack.c.h.b16 %v1119
    %v1416 = vunpack.c.l.b16 %v1120
    %v1417 = vunpack.c.l.b16 %v1121
    %v1418 = vunpack.c.h.b16 %v1121
    %v1419 = vunpack.c.l.b16 %v1122
    %v1420 = vunpack.c.h.b16 %v1122
    %v1421 = vunpack.c.l.b16 %v1123
    %v1422 = vunpack.c.h.b16 %v1123
    %v1423 = vunpack.c.l.b16 %v1124
    %v1424 = vunpack.c.l.b16 %v1125
    %v1425 = vunpack.c.h.b16 %v1125
    %v1426 = vunpack.c.l.b16 %v1126
    %v1427 = vunpack.c.h.b16 %v1126
    %v1428 = vunpack.c.l.b16 %v1127
    %v1429 = vunpack.c.h.b16 %v1127
    %v1430 = vunpack.c.l.b16 %v1128
    %v1431 = vunpack.c.l.b16 %v1129
    %v1432 = vunpack.c.h.b16 %v1129
    %v1433 = vunpack.c.l.b16 %v1130
    %v1434 = vunpack.c.h.b16 %v1130
    %v1435 = vunpack.c.l.b16 %v1131
    %v1436 = vunpack.c.h.b16 %v1131
    %v1437 = vunpack.c.l.b16 %v1132
    %v1438 = vunpack.c.l.b16 %v1133
    %v1439 = vunpack.c.h.b16 %v1133
    %v1440 = vunpack.c.l.b16 %v1134
    %v1441 = vunpack.c.h.b16 %v1134
    %v1442 = vunpack.c.l.b16 %v1135
    %v1443 = vunpack.c.h.b16 %v1135
    %v1444 = vunpack.c.l.b16 %v1136
    %v1445 = vunpack.c.l.b16 %v1137
    %v1446 = vunpack.c.h.b16 %v1137
    %v1447 = vunpack.c.l.b16 %v1138
    %v1448 = vunpack.c.h.b16 %v1138
    %v1449 = vunpack.c.l.b16 %v1139
    %v1450 = vunpack.c.h.b16 %v1139
    %v1451 = vunpack.c.l.b16 %v1140
    %v1452 = vunpack.c.l.b16 %v1141
    %v1453 = vunpack.c.h.b16 %v1141
    %v1454 = vunpack.c.l.b16 %v1142
    %v1455 = vunpack.c.h.b16 %v1142
    %v1456 = vunpack.c.l.b16 %v1143
    %v1457 = vunpack.c.h.b16 %v1143
    %v1458 = vunpack.c.l.b16 %v1144
    %v1459 = vunpack.c.l.b16 %v1145
    %v1460 = vunpack.c.h.b16 %v1145
    %v1461 = vunpack.c.l.b16 %v1146
    %v1462 = vunpack.c.h.b16 %v1146
    %v1463 = vunpack.c.l.b16 %v1147
    %v1464 = vunpack.c.h.b16 %v1147
    %v1465 = vunpack.c.l.b16 %v1148
    %v1466 = vunpack.c.l.b16 %v1149
    %v1467 = vunpack.c.h.b16 %v1149
    %v1468 = vunpack.c.l.b16 %v1150
    %v1469 = vunpack.c.h.b16 %v1150
    %v1470 = vunpack.c.l.b16 %v1151
    %v1471 = vunpack.c.h.b16 %v1151
    %v1472 = vunpack.c.l.b16 %v1152
    %v1473 = vunpack.c.l.b16 %v1153
    %v1474 = vunpack.c.h.b16 %v1153
    %v1475 = vunpack.c.l.b16 %v1154
    %v1476 = vunpack.c.h.b16 %v1154
    %v1477 = vunpack.c.l.b16 %v1155
    %v1478 = vunpack.c.h.b16 %v1155
    %v1479 = vunpack.c.l.b16 %v1156
    %v1480 = vunpack.c.l.b16 %v1157
    %v1481 = vunpack.c.h.b16 %v1157
    %v1482 = vunpack.c.l.b16 %v1158
    %v1483 = vunpack.c.h.b16 %v1158
    %v1484 = vunpack.c.l.b16 %v1159
    %v1485 = vunpack.c.h.b16 %v1159
    %v1486 = vunpack.c.l.b16 %v1160
    %v1487 = vunpack.c.l.b16 %v1161
    %v1488 = vunpack.c.h.b16 %v1161
    %v1489 = vunpack.c.l.b16 %v1162
    %v1490 = vunpack.c.h.b16 %v1162
    %v1491 = vunpack.c.l.b16 %v1163
    %v1492 = vunpack.c.h.b16 %v1163
    %v1493 = vunpack.c.l.b16 %v1164
    %v1494 = vunpack.c.l.b16 %v1165
    %v1495 = vunpack.c.h.b16 %v1165
    %v1496 = vunpack.c.l.b16 %v1166
    %v1497 = vunpack.c.h.b16 %v1166
    %v1498 = vunpack.c.l.b16 %v1167
    %v1499 = vunpack.c.h.b16 %v1167
    %v1500 = vunpack.c.l.b16 %v1168
    %v1501 = vunpack.c.l.b16 %v1169
    %v1502 = vunpack.c.h.b16 %v1169
    %v1503 = vunpack.c.l.b16 %v1170
    %v1504 = vunpack.c.h.b16 %v1170
    %v1505 = vunpack.c.l.b16 %v1171
    %v1506 = vunpack.c.h.b16 %v1171
    %v1507 = vunpack.c.l.b16 %v1172
    %v1508 = vunpack.c.l.b16 %v1173
    %v1509 = vunpack.c.h.b16 %v1173
    %v1510 = vunpack.c.l.b16 %v1174
    %v1511 = vunpack.c.h.b16 %v1174
    %v1512 = vunpack.c.l.b16 %v1175
    %v1513 = vunpack.c.h.b16 %v1175
    %v1514 = vunpack.c.l.b16 %v1176
    %v1515 = vunpack.c.l.b16 %v1177
    %v1516 = vunpack.c.h.b16 %v1177
    %v1517 = vunpack.c.l.b16 %v1178
    %v1518 = vunpack.c.h.b16 %v1178
    %v1519 = vunpack.c.l.b16 %v1179
    %v1520 = vunpack.c.h.b16 %v1179
    %v1521 = vunpack.c.l.b16 %v1180
    %v1522 = vunpack.c.l.b16 %v1181
    %v1523 = vunpack.c.h.b16 %v1181
    %v1524 = vunpack.c.l.b16 %v1182
    %v1525 = vunpack.c.h.b16 %v1182
    %v1526 = vunpack.c.l.b16 %v1183
    %v1527 = vunpack.c.h.b16 %v1183
    %v1528 = vunpack.c.l.b16 %v1184
    %v1529 = vunpack.c.l.b16 %v1185
    %v1530 = vunpack.c.h.b16 %v1185
    %v1531 = vunpack.c.l.b16 %v1186
    %v1532 = vunpack.c.h.b16 %v1186
    %v1533 = vunpack.c.l.b16 %v1187
    %v1534 = vunpack.c.h.b16 %v1187
    %v1535 = vunpack.c.l.b16 %v1188
    %v1536 = vunpack.c.l.b16 %v1189
    %v1537 = vunpack.c.h.b16 %v1189
    %v1538 = vunpack.c.l.b16 %v1190
    %v1539 = vunpack.c.h.b16 %v1190
    %v1540 = vunpack.c.l.b16 %v1191
    %v1541 = vunpack.c.h.b16 %v1191
    %v1542 = vunpack.c.l.b16 %v1192
    %v1543 = vunpack.c.l.b16 %v1193
    %v1544 = vunpack.c.h.b16 %v1193
    %v1545 = vunpack.c.l.b16 %v1194
    %v1546 = vunpack.c.h.b16 %v1194
    %v1547 = vunpack.c.l.b16 %v1195
    %v1548 = vunpack.c.h.b16 %v1195
    %v1549 = vunpack.c.l.b16 %v1196
    %v1550 = vunpack.c.l.b16 %v1197
    %v1551 = vunpack.c.h.b16 %v1197
    %v1552 = vunpack.c.l.b16 %v1198
    %v1553 = vunpack.c.h.b16 %v1198
    %v1554 = vunpack.c.l.b16 %v1199
    %v1555 = vunpack.c.h.b16 %v1199
    %v1556 = vunpack.c.l.b16 %v1200
    %v1557 = vunpack.c.l.b16 %v1201
    %v1558 = vunpack.c.h.b16 %v1201
    %v1559 = vunpack.c.l.b16 %v1202
    %v1560 = vunpack.c.h.b16 %v1202
    %v1561 = vunpack.c.l.b16 %v1203
    %v1562 = vunpack.c.h.b16 %v1203
    %v1563 = vunpack.c.l.b16 %v1204
    %v1564 = vpack.c.b16 %v1347, %v1340
    %v1565 = vpack.c.b16 %v1348, %v1341
    %v1566 = vpack.c.b16 %v1349, %v1342
    %v1567 = vpack.c.b16 %v1350, %v1343
    %v1568 = vpack.c.b16 %v1351, %v1344
    %v1569 = vpack.c.b16 %v1352, %v1345
    %v1570 = vpack.c.b16 %v1353, %v1346
    %v1571 = vpack.c.b16 %v1361, %v1354
    %v1572 = vpack.c.b16 %v1362, %v1355
    %v1573 = vpack.c.b16 %v1363, %v1356
    %v1574 = vpack.c.b16 %v1364, %v1357
    %v1575 = vpack.c.b16 %v1365, %v1358
    %v1576 = vpack.c.b16 %v1366, %v1359
    %v1577 = vpack.c.b16 %v1367, %v1360
    %v1578 = vpack.c.b16 %v1375, %v1368
    %v1579 = vpack.c.b16 %v1376, %v1369
    %v1580 = vpack.c.b16 %v1377, %v1370
    %v1581 = vpack.c.b16 %v1378, %v1371
    %v1582 = vpack.c.b16 %v1379, %v1372
    %v1583 = vpack.c.b16 %v1380, %v1373
    %v1584 = vpack.c.b16 %v1381, %v1374
    %v1585 = vpack.c.b16 %v1389, %v1382
    %v1586 = vpack.c.b16 %v1390, %v1383
    %v1587 = vpack.c.b16 %v1391, %v1384
    %v1588 = vpack.c.b16 %v1392, %v1385
    %v1589 = vpack.c.b16 %v1393, %v1386
    %v1590 = vpack.c.b16 %v1394, %v1387
    %v1591 = vpack.c.b16 %v1395, %v1388
    %v1592 = vpack.c.b16 %v1403, %v1396
    %v1593 = vpack.c.b16 %v1404, %v1397
    %v1594 = vpack.c.b16 %v1405, %v1398
    %v1595 = vpack.c.b16 %v1406, %v1399
    %v1596 = vpack.c.b16 %v1407, %v1400
    %v1597 = vpack.c.b16 %v1408, %v1401
    %v1598 = vpack.c.b16 %v1409, %v1402
    %v1599 = vpack.c.b16 %v1417, %v1410
    %v1600 = vpack.c.b16 %v1418, %v1411
    %v1601 = vpack.c.b16 %v1419, %v1412
    %v1602 = vpack.c.b16 %v1420, %v1413
    %v1603 = vpack.c.b16 %v1421, %v1414
    %v1604 = vpack.c.b16 %v1422, %v1415
    %v1605 = vpack.c.b16 %v1423, %v1416
    %v1606 = vpack.c.b16 %v1431, %v1424
    %v1607 = vpack.c.b16 %v1432, %v1425
    %v1608 = vpack.c.b16 %v1433, %v1426
    %v1609 = vpack.c.b16 %v1434, %v1427
    %v1610 = vpack.c.b16 %v1435, %v1428
    %v1611 = vpack.c.b16 %v1436, %v1429
    %v1612 = vpack.c.b16 %v1437, %v1430
    %v1613 = vpack.c.b16 %v1445, %v1438
    %v1614 = vpack.c.b16 %v1446, %v1439
    %v1615 = vpack.c.b16 %v1447, %v1440
    %v1616 = vpack.c.b16 %v1448, %v1441
    %v1617 = vpack.c.b16 %v1449, %v1442
    %v1618 = vpack.c.b16 %v1450, %v1443
    %v1619 = vpack.c.b16 %v1451, %v1444
    %v1620 = vpack.c.b16 %v1459, %v1452
    %v1621 = vpack.c.b16 %v1460, %v1453
    %v1622 = vpack.c.b16 %v1461, %v1454
    %v1623 = vpack.c.b16 %v1462, %v1455
    %v1624 = vpack.c.b16 %v1463, %v1456
    %v1625 = vpack.c.b16 %v1464, %v1457
    %v1626 = vpack.c.b16 %v1465, %v1458
    %v1627 = vpack.c.b16 %v1473, %v1466
    %v1628 = vpack.c.b16 %v1474, %v1467
    %v1629 = vpack.c.b16 %v1475, %v1468
    %v1630 = vpack.c.b16 %v1476, %v1469
    %v1631 = vpack.c.b16 %v1477, %v1470
    %v1632 = vpack.c.b16 %v1478, %v1471
    %v1633 = vpack.c.b16 %v1479, %v1472
    %v1634 = vpack.c.b16 %v1487, %v1480
    %v1635 = vpack.c.b16 %v1488, %v1481
    %v1636 = vpack.c.b16 %v1489, %v1482
    %v1637 = vpack.c.b16 %v1490, %v1483
    %v1638 = vpack.c.b16 %v1491, %v1484
    %v1639 = vpack.c.b16 %v1492, %v1485
    %v1640 = vpack.c.b16 %v1493, %v1486
    %v1641 = vpack.c.b16 %v1501, %v1494
    %v1642 = vpack.c.b16 %v1502, %v1495
    %v1643 = vpack.c.b16 %v1503, %v1496
    %v1644 = vpack.c.b16 %v1504, %v1497
    %v1645 = vpack.c.b16 %v1505, %v1498
    %v1646 = vpack.c.b16 %v1506, %v1499
    %v1647 = vpack.c.b16 %v1507, %v1500
    %v1648 = vpack.c.b16 %v1515, %v1508
    %v1649 = vpack.c.b16 %v1516, %v1509
    %v1650 = vpack.c.b16 %v1517, %v1510
    %v1651 = vpack.c.b16 %v1518, %v1511
    %v1652 = vpack.c.b16 %v1519, %v1512
    %v1653 = vpack.c.b16 %v1520, %v1513
    %v1654 = vpack.c.b16 %v1521, %v1514
    %v1655 = vpack.c.b16 %v1529, %v1522
    %v1656 = vpack.c.b16 %v1530, %v1523
    %v1657 = vpack.c.b16 %v1531, %v1524
    %v1658 = vpack.c.b16 %v1532, %v1525
    %v1659 = vpack.c.b16 %v1533, %v1526
    %v1660 = vpack.c.b16 %v1534, %v1527
    %v1661 = vpack.c.b16 %v1535, %v1528
    %v1662 = vpack.c.b16 %v1543, %v1536
    %v1663 = vpack.c.b16 %v1544, %v1537
    %v1664 = vpack.c.b16 %v1545, %v1538
    %v1665 = vpack.c.b16 %v1546, %v1539
    %v1666 = vpack.c.b16 %v1547, %v1540
    %v1667 = vpack.c.b16 %v1548, %v1541
    %v1668 = vpack.c.b16 %v1549, %v1542
    %v1669 = vpack.c.b16 %v1557, %v1550
    %v1670 = vpack.c.b16 %v1558, %v1551
    %v1671 = vpack.c.b16 %v1559, %v1552
    %v1672 = vpack.c.b16 %v1560, %v1553
    %v1673 = vpack.c.b16 %v1561, %v1554
    %v1674 = vpack.c.b16 %v1562, %v1555
    %v1675 = vpack.c.b16 %v1563, %v1556
    %1788 = vmatpush.bf16.msra.mxu0 %v1613
    %1789 = vmatpush.bf16.msra.mxu0 %v1606
    %1790 = vmatpush.bf16.msra.mxu0 %v1599
    %1791 = vmatpush.bf16.msra.mxu0 %v1592
    %1792 = vmatpush.bf16.msra.mxu0 %v1585
    %1793 = vmatpush.bf16.msra.mxu0 %v1578
    %1794 = vmatpush.bf16.msra.mxu0 %v1571
    %1795 = vmatpush.bf16.msra.mxu0 %v1564
    %1796 = vmatmul.bf16.gmra.mxu0 %v1061
    %v1797 = vpop.f32.mrf.mxu0
    %v1798 = vadd.f32 %v1205, %v1797
    %v1799 = vpop.f32.mrf.mxu0
    %v1800 = vadd.f32 %v1205, %v1799
    %1801 = vmatmul.bf16.gmra.mxu0 %v1063
    %v1802 = vpop.f32.mrf.mxu0
    %v1803 = vadd.f32 %v1205, %v1802
    %v1804 = vpop.f32.mrf.mxu0
    %v1805 = vadd.f32 %v1205, %v1804
    %1806 = vmatmul.bf16.gmra.mxu0 %v1065
    %v1807 = vpop.f32.mrf.mxu0
    %v1808 = vadd.f32 %v1205, %v1807
    %v1809 = vpop.f32.mrf.mxu0
    %v1810 = vadd.f32 %v1205, %v1809
    %1811 = vmatmul.bf16.gmra.mxu0 %v1067
    %v1812 = vpop.f32.mrf.mxu0
    %v1813 = vadd.f32 %v1205, %v1812
    %v1814 = vpop.f32.mrf.mxu0
    %v1815 = vadd.f32 %v1205, %v1814
    %1816 = vmatmul.bf16.gmra.mxu0 %v1069
    %v1817 = vpop.f32.mrf.mxu0
    %v1818 = vadd.f32 %v1205, %v1817
    %v1819 = vpop.f32.mrf.mxu0
    %v1820 = vadd.f32 %v1205, %v1819
    %1821 = vmatmul.bf16.gmra.mxu0 %v1071
    %v1822 = vpop.f32.mrf.mxu0
    %v1823 = vadd.f32 %v1205, %v1822
    %v1824 = vpop.f32.mrf.mxu0
    %v1825 = vadd.f32 %v1205, %v1824
    %1826 = vmatmul.bf16.gmra.mxu0 %v1073
    %v1827 = vpop.f32.mrf.mxu0
    %v1828 = vadd.f32 %v1205, %v1827
    %v1829 = vpop.f32.mrf.mxu0
    %v1830 = vadd.f32 %v1205, %v1829
    %1831 = vmatmul.bf16.gmra.mxu0 %v1075
    %v1832 = vpop.f32.mrf.mxu0
    %v1833 = vadd.f32 %v1205, %v1832
    %v1834 = vpop.f32.mrf.mxu0
    %v1835 = vadd.f32 %v1205, %v1834
    %1836 = vdwg.mxu0
    %1837 = vmatpush.bf16.msra.mxu0 %v1669
    %1838 = vmatpush.bf16.msra.mxu0 %v1662
    %1839 = vmatpush.bf16.msra.mxu0 %v1655
    %1840 = vmatpush.bf16.msra.mxu0 %v1648
    %1841 = vmatpush.bf16.msra.mxu0 %v1641
    %1842 = vmatpush.bf16.msra.mxu0 %v1634
    %1843 = vmatpush.bf16.msra.mxu0 %v1627
    %1844 = vmatpush.bf16.msra.mxu0 %v1620
    %1845 = vmatmul.bf16.gmra.mxu0 %v1062
    %v1846 = vpop.f32.mrf.mxu0
    %v1847 = vadd.f32 %v1798, %v1846
    %v1848 = vpop.f32.mrf.mxu0
    %v1849 = vadd.f32 %v1800, %v1848
    %1850 = vmatmul.bf16.gmra.mxu0 %v1064
    %v1851 = vpop.f32.mrf.mxu0
    %v1852 = vadd.f32 %v1803, %v1851
    %v1853 = vpop.f32.mrf.mxu0
    %v1854 = vadd.f32 %v1805, %v1853
    %1855 = vmatmul.bf16.gmra.mxu0 %v1066
    %v1856 = vpop.f32.mrf.mxu0
    %v1857 = vadd.f32 %v1808, %v1856
    %v1858 = vpop.f32.mrf.mxu0
    %v1859 = vadd.f32 %v1810, %v1858
    %1860 = vmatmul.bf16.gmra.mxu0 %v1068
    %v1861 = vpop.f32.mrf.mxu0
    %v1862 = vadd.f32 %v1813, %v1861
    %v1863 = vpop.f32.mrf.mxu0
    %v1864 = vadd.f32 %v1815, %v1863
    %1865 = vmatmul.bf16.gmra.mxu0 %v1070
    %v1866 = vpop.f32.mrf.mxu0
    %v1867 = vadd.f32 %v1818, %v1866
    %v1868 = vpop.f32.mrf.mxu0
    %v1869 = vadd.f32 %v1820, %v1868
    %1870 = vmatmul.bf16.gmra.mxu0 %v1072
    %v1871 = vpop.f32.mrf.mxu0
    %v1872 = vadd.f32 %v1823, %v1871
    %v1873 = vpop.f32.mrf.mxu0
    %v1874 = vadd.f32 %v1825, %v1873
    %1875 = vmatmul.bf16.gmra.mxu0 %v1074
    %v1876 = vpop.f32.mrf.mxu0
    %v1877 = vadd.f32 %v1828, %v1876
    %v1878 = vpop.f32.mrf.mxu0
    %v1879 = vadd.f32 %v1830, %v1878
    %1880 = vmatmul.bf16.gmra.mxu0 %v1076
    %v1881 = vpop.f32.mrf.mxu0
    %v1882 = vadd.f32 %v1833, %v1881
    %v1883 = vpop.f32.mrf.mxu0
    %v1884 = vadd.f32 %v1835, %v1883
    %1885 = vdwg.mxu0
    %1886 = vmatpush.bf16.msra.mxu0 %v1614
    %1887 = vmatpush.bf16.msra.mxu0 %v1607
    %1888 = vmatpush.bf16.msra.mxu0 %v1600
    %1889 = vmatpush.bf16.msra.mxu0 %v1593
    %1890 = vmatpush.bf16.msra.mxu0 %v1586
    %1891 = vmatpush.bf16.msra.mxu0 %v1579
    %1892 = vmatpush.bf16.msra.mxu0 %v1572
    %1893 = vmatpush.bf16.msra.mxu0 %v1565
    %1894 = vmatmul.bf16.gmra.mxu0 %v1061
    %v1895 = vpop.f32.mrf.mxu0
    %v1896 = vadd.f32 %v1206, %v1895
    %v1897 = vpop.f32.mrf.mxu0
    %v1898 = vadd.f32 %v1206, %v1897
    %1899 = vmatmul.bf16.gmra.mxu0 %v1063
    %v1900 = vpop.f32.mrf.mxu0
    %v1901 = vadd.f32 %v1206, %v1900
    %v1902 = vpop.f32.mrf.mxu0
    %v1903 = vadd.f32 %v1206, %v1902
    %1904 = vmatmul.bf16.gmra.mxu0 %v1065
    %v1905 = vpop.f32.mrf.mxu0
    %v1906 = vadd.f32 %v1206, %v1905
    %v1907 = vpop.f32.mrf.mxu0
    %v1908 = vadd.f32 %v1206, %v1907
    %1909 = vmatmul.bf16.gmra.mxu0 %v1067
    %v1910 = vpop.f32.mrf.mxu0
    %v1911 = vadd.f32 %v1206, %v1910
    %v1912 = vpop.f32.mrf.mxu0
    %v1913 = vadd.f32 %v1206, %v1912
    %1914 = vmatmul.bf16.gmra.mxu0 %v1069
    %v1915 = vpop.f32.mrf.mxu0
    %v1916 = vadd.f32 %v1206, %v1915
    %v1917 = vpop.f32.mrf.mxu0
    %v1918 = vadd.f32 %v1206, %v1917
    %1919 = vmatmul.bf16.gmra.mxu0 %v1071
    %v1920 = vpop.f32.mrf.mxu0
    %v1921 = vadd.f32 %v1206, %v1920
    %v1922 = vpop.f32.mrf.mxu0
    %v1923 = vadd.f32 %v1206, %v1922
    %1924 = vmatmul.bf16.gmra.mxu0 %v1073
    %v1925 = vpop.f32.mrf.mxu0
    %v1926 = vadd.f32 %v1206, %v1925
    %v1927 = vpop.f32.mrf.mxu0
    %v1928 = vadd.f32 %v1206, %v1927
    %1929 = vmatmul.bf16.gmra.mxu0 %v1075
    %v1930 = vpop.f32.mrf.mxu0
    %v1931 = vadd.f32 %v1206, %v1930
    %v1932 = vpop.f32.mrf.mxu0
    %v1933 = vadd.f32 %v1206, %v1932
    %1934 = vdwg.mxu0
    %1935 = vmatpush.bf16.msra.mxu0 %v1670
    %1936 = vmatpush.bf16.msra.mxu0 %v1663
    %1937 = vmatpush.bf16.msra.mxu0 %v1656
    %1938 = vmatpush.bf16.msra.mxu0 %v1649
    %1939 = vmatpush.bf16.msra.mxu0 %v1642
    %1940 = vmatpush.bf16.msra.mxu0 %v1635
    %1941 = vmatpush.bf16.msra.mxu0 %v1628
    %1942 = vmatpush.bf16.msra.mxu0 %v1621
    %1943 = vmatmul.bf16.gmra.mxu0 %v1062
    %v1944 = vpop.f32.mrf.mxu0
    %v1945 = vadd.f32 %v1896, %v1944
    %v1946 = vpop.f32.mrf.mxu0
    %v1947 = vadd.f32 %v1898, %v1946
    %1948 = vmatmul.bf16.gmra.mxu0 %v1064
    %v1949 = vpop.f32.mrf.mxu0
    %v1950 = vadd.f32 %v1901, %v1949
    %v1951 = vpop.f32.mrf.mxu0
    %v1952 = vadd.f32 %v1903, %v1951
    %1953 = vmatmul.bf16.gmra.mxu0 %v1066
    %v1954 = vpop.f32.mrf.mxu0
    %v1955 = vadd.f32 %v1906, %v1954
    %v1956 = vpop.f32.mrf.mxu0
    %v1957 = vadd.f32 %v1908, %v1956
    %1958 = vmatmul.bf16.gmra.mxu0 %v1068
    %v1959 = vpop.f32.mrf.mxu0
    %v1960 = vadd.f32 %v1911, %v1959
    %v1961 = vpop.f32.mrf.mxu0
    %v1962 = vadd.f32 %v1913, %v1961
    %1963 = vmatmul.bf16.gmra.mxu0 %v1070
    %v1964 = vpop.f32.mrf.mxu0
    %v1965 = vadd.f32 %v1916, %v1964
    %v1966 = vpop.f32.mrf.mxu0
    %v1967 = vadd.f32 %v1918, %v1966
    %1968 = vmatmul.bf16.gmra.mxu0 %v1072
    %v1969 = vpop.f32.mrf.mxu0
    %v1970 = vadd.f32 %v1921, %v1969
    %v1971 = vpop.f32.mrf.mxu0
    %v1972 = vadd.f32 %v1923, %v1971
    %1973 = vmatmul.bf16.gmra.mxu0 %v1074
    %v1974 = vpop.f32.mrf.mxu0
    %v1975 = vadd.f32 %v1926, %v1974
    %v1976 = vpop.f32.mrf.mxu0
    %v1977 = vadd.f32 %v1928, %v1976
    %1978 = vmatmul.bf16.gmra.mxu0 %v1076
    %v1979 = vpop.f32.mrf.mxu0
    %v1980 = vadd.f32 %v1931, %v1979
    %v1981 = vpop.f32.mrf.mxu0
    %v1982 = vadd.f32 %v1933, %v1981
    %1983 = vdwg.mxu0
    %1984 = vmatpush.bf16.msra.mxu0 %v1615
    %1985 = vmatpush.bf16.msra.mxu0 %v1608
    %1986 = vmatpush.bf16.msra.mxu0 %v1601
    %1987 = vmatpush.bf16.msra.mxu0 %v1594
    %1988 = vmatpush.bf16.msra.mxu0 %v1587
    %1989 = vmatpush.bf16.msra.mxu0 %v1580
    %1990 = vmatpush.bf16.msra.mxu0 %v1573
    %1991 = vmatpush.bf16.msra.mxu0 %v1566
    %1992 = vmatmul.bf16.gmra.mxu0 %v1061
    %v1993 = vpop.f32.mrf.mxu0
    %v1994 = vadd.f32 %v1207, %v1993
    %v1995 = vpop.f32.mrf.mxu0
    %v1996 = vadd.f32 %v1207, %v1995
    %1997 = vmatmul.bf16.gmra.mxu0 %v1063
    %v1998 = vpop.f32.mrf.mxu0
    %v1999 = vadd.f32 %v1207, %v1998
    %v2000 = vpop.f32.mrf.mxu0
    %v2001 = vadd.f32 %v1207, %v2000
    %2002 = vmatmul.bf16.gmra.mxu0 %v1065
    %v2003 = vpop.f32.mrf.mxu0
    %v2004 = vadd.f32 %v1207, %v2003
    %v2005 = vpop.f32.mrf.mxu0
    %v2006 = vadd.f32 %v1207, %v2005
    %2007 = vmatmul.bf16.gmra.mxu0 %v1067
    %v2008 = vpop.f32.mrf.mxu0
    %v2009 = vadd.f32 %v1207, %v2008
    %v2010 = vpop.f32.mrf.mxu0
    %v2011 = vadd.f32 %v1207, %v2010
    %2012 = vmatmul.bf16.gmra.mxu0 %v1069
    %v2013 = vpop.f32.mrf.mxu0
    %v2014 = vadd.f32 %v1207, %v2013
    %v2015 = vpop.f32.mrf.mxu0
    %v2016 = vadd.f32 %v1207, %v2015
    %2017 = vmatmul.bf16.gmra.mxu0 %v1071
    %v2018 = vpop.f32.mrf.mxu0
    %v2019 = vadd.f32 %v1207, %v2018
    %v2020 = vpop.f32.mrf.mxu0
    %v2021 = vadd.f32 %v1207, %v2020
    %2022 = vmatmul.bf16.gmra.mxu0 %v1073
    %v2023 = vpop.f32.mrf.mxu0
    %v2024 = vadd.f32 %v1207, %v2023
    %v2025 = vpop.f32.mrf.mxu0
    %v2026 = vadd.f32 %v1207, %v2025
    %2027 = vmatmul.bf16.gmra.mxu0 %v1075
    %v2028 = vpop.f32.mrf.mxu0
    %v2029 = vadd.f32 %v1207, %v2028
    %v2030 = vpop.f32.mrf.mxu0
    %v2031 = vadd.f32 %v1207, %v2030
    %2032 = vdwg.mxu0
    %2033 = vmatpush.bf16.msra.mxu0 %v1671
    %2034 = vmatpush.bf16.msra.mxu0 %v1664
    %2035 = vmatpush.bf16.msra.mxu0 %v1657
    %2036 = vmatpush.bf16.msra.mxu0 %v1650
    %2037 = vmatpush.bf16.msra.mxu0 %v1643
    %2038 = vmatpush.bf16.msra.mxu0 %v1636
    %2039 = vmatpush.bf16.msra.mxu0 %v1629
    %2040 = vmatpush.bf16.msra.mxu0 %v1622
    %2041 = vmatmul.bf16.gmra.mxu0 %v1062
    %v2042 = vpop.f32.mrf.mxu0
    %v2043 = vadd.f32 %v1994, %v2042
    %v2044 = vpop.f32.mrf.mxu0
    %v2045 = vadd.f32 %v1996, %v2044
    %2046 = vmatmul.bf16.gmra.mxu0 %v1064
    %v2047 = vpop.f32.mrf.mxu0
    %v2048 = vadd.f32 %v1999, %v2047
    %v2049 = vpop.f32.mrf.mxu0
    %v2050 = vadd.f32 %v2001, %v2049
    %2051 = vmatmul.bf16.gmra.mxu0 %v1066
    %v2052 = vpop.f32.mrf.mxu0
    %v2053 = vadd.f32 %v2004, %v2052
    %v2054 = vpop.f32.mrf.mxu0
    %v2055 = vadd.f32 %v2006, %v2054
    %2056 = vmatmul.bf16.gmra.mxu0 %v1068
    %v2057 = vpop.f32.mrf.mxu0
    %v2058 = vadd.f32 %v2009, %v2057
    %v2059 = vpop.f32.mrf.mxu0
    %v2060 = vadd.f32 %v2011, %v2059
    %2061 = vmatmul.bf16.gmra.mxu0 %v1070
    %v2062 = vpop.f32.mrf.mxu0
    %v2063 = vadd.f32 %v2014, %v2062
    %v2064 = vpop.f32.mrf.mxu0
    %v2065 = vadd.f32 %v2016, %v2064
    %2066 = vmatmul.bf16.gmra.mxu0 %v1072
    %v2067 = vpop.f32.mrf.mxu0
    %v2068 = vadd.f32 %v2019, %v2067
    %v2069 = vpop.f32.mrf.mxu0
    %v2070 = vadd.f32 %v2021, %v2069
    %2071 = vmatmul.bf16.gmra.mxu0 %v1074
    %v2072 = vpop.f32.mrf.mxu0
    %v2073 = vadd.f32 %v2024, %v2072
    %v2074 = vpop.f32.mrf.mxu0
    %v2075 = vadd.f32 %v2026, %v2074
    %2076 = vmatmul.bf16.gmra.mxu0 %v1076
    %v2077 = vpop.f32.mrf.mxu0
    %v2078 = vadd.f32 %v2029, %v2077
    %v2079 = vpop.f32.mrf.mxu0
    %v2080 = vadd.f32 %v2031, %v2079
    %2081 = vdwg.mxu0
    %2082 = vmatpush.bf16.msra.mxu0 %v1616
    %2083 = vmatpush.bf16.msra.mxu0 %v1609
    %2084 = vmatpush.bf16.msra.mxu0 %v1602
    %2085 = vmatpush.bf16.msra.mxu0 %v1595
    %2086 = vmatpush.bf16.msra.mxu0 %v1588
    %2087 = vmatpush.bf16.msra.mxu0 %v1581
    %2088 = vmatpush.bf16.msra.mxu0 %v1574
    %2089 = vmatpush.bf16.msra.mxu0 %v1567
    %2090 = vmatmul.bf16.gmra.mxu0 %v1061
    %v2091 = vpop.f32.mrf.mxu0
    %v2092 = vadd.f32 %v1208, %v2091
    %v2093 = vpop.f32.mrf.mxu0
    %v2094 = vadd.f32 %v1208, %v2093
    %2095 = vmatmul.bf16.gmra.mxu0 %v1063
    %v2096 = vpop.f32.mrf.mxu0
    %v2097 = vadd.f32 %v1208, %v2096
    %v2098 = vpop.f32.mrf.mxu0
    %v2099 = vadd.f32 %v1208, %v2098
    %2100 = vmatmul.bf16.gmra.mxu0 %v1065
    %v2101 = vpop.f32.mrf.mxu0
    %v2102 = vadd.f32 %v1208, %v2101
    %v2103 = vpop.f32.mrf.mxu0
    %v2104 = vadd.f32 %v1208, %v2103
    %2105 = vmatmul.bf16.gmra.mxu0 %v1067
    %v2106 = vpop.f32.mrf.mxu0
    %v2107 = vadd.f32 %v1208, %v2106
    %v2108 = vpop.f32.mrf.mxu0
    %v2109 = vadd.f32 %v1208, %v2108
    %2110 = vmatmul.bf16.gmra.mxu0 %v1069
    %v2111 = vpop.f32.mrf.mxu0
    %v2112 = vadd.f32 %v1208, %v2111
    %v2113 = vpop.f32.mrf.mxu0
    %v2114 = vadd.f32 %v1208, %v2113
    %2115 = vmatmul.bf16.gmra.mxu0 %v1071
    %v2116 = vpop.f32.mrf.mxu0
    %v2117 = vadd.f32 %v1208, %v2116
    %v2118 = vpop.f32.mrf.mxu0
    %v2119 = vadd.f32 %v1208, %v2118
    %2120 = vmatmul.bf16.gmra.mxu0 %v1073
    %v2121 = vpop.f32.mrf.mxu0
    %v2122 = vadd.f32 %v1208, %v2121
    %v2123 = vpop.f32.mrf.mxu0
    %v2124 = vadd.f32 %v1208, %v2123
    %2125 = vmatmul.bf16.gmra.mxu0 %v1075
    %v2126 = vpop.f32.mrf.mxu0
    %v2127 = vadd.f32 %v1208, %v2126
    %v2128 = vpop.f32.mrf.mxu0
    %v2129 = vadd.f32 %v1208, %v2128
    %2130 = vdwg.mxu0
    %2131 = vmatpush.bf16.msra.mxu0 %v1672
    %2132 = vmatpush.bf16.msra.mxu0 %v1665
    %2133 = vmatpush.bf16.msra.mxu0 %v1658
    %2134 = vmatpush.bf16.msra.mxu0 %v1651
    %2135 = vmatpush.bf16.msra.mxu0 %v1644
    %2136 = vmatpush.bf16.msra.mxu0 %v1637
    %2137 = vmatpush.bf16.msra.mxu0 %v1630
    %2138 = vmatpush.bf16.msra.mxu0 %v1623
    %2139 = vmatmul.bf16.gmra.mxu0 %v1062
    %v2140 = vpop.f32.mrf.mxu0
    %v2141 = vadd.f32 %v2092, %v2140
    %v2142 = vpop.f32.mrf.mxu0
    %v2143 = vadd.f32 %v2094, %v2142
    %2144 = vmatmul.bf16.gmra.mxu0 %v1064
    %v2145 = vpop.f32.mrf.mxu0
    %v2146 = vadd.f32 %v2097, %v2145
    %v2147 = vpop.f32.mrf.mxu0
    %v2148 = vadd.f32 %v2099, %v2147
    %2149 = vmatmul.bf16.gmra.mxu0 %v1066
    %v2150 = vpop.f32.mrf.mxu0
    %v2151 = vadd.f32 %v2102, %v2150
    %v2152 = vpop.f32.mrf.mxu0
    %v2153 = vadd.f32 %v2104, %v2152
    %2154 = vmatmul.bf16.gmra.mxu0 %v1068
    %v2155 = vpop.f32.mrf.mxu0
    %v2156 = vadd.f32 %v2107, %v2155
    %v2157 = vpop.f32.mrf.mxu0
    %v2158 = vadd.f32 %v2109, %v2157
    %2159 = vmatmul.bf16.gmra.mxu0 %v1070
    %v2160 = vpop.f32.mrf.mxu0
    %v2161 = vadd.f32 %v2112, %v2160
    %v2162 = vpop.f32.mrf.mxu0
    %v2163 = vadd.f32 %v2114, %v2162
    %2164 = vmatmul.bf16.gmra.mxu0 %v1072
    %v2165 = vpop.f32.mrf.mxu0
    %v2166 = vadd.f32 %v2117, %v2165
    %v2167 = vpop.f32.mrf.mxu0
    %v2168 = vadd.f32 %v2119, %v2167
    %2169 = vmatmul.bf16.gmra.mxu0 %v1074
    %v2170 = vpop.f32.mrf.mxu0
    %v2171 = vadd.f32 %v2122, %v2170
    %v2172 = vpop.f32.mrf.mxu0
    %v2173 = vadd.f32 %v2124, %v2172
    %2174 = vmatmul.bf16.gmra.mxu0 %v1076
    %v2175 = vpop.f32.mrf.mxu0
    %v2176 = vadd.f32 %v2127, %v2175
    %v2177 = vpop.f32.mrf.mxu0
    %v2178 = vadd.f32 %v2129, %v2177
    %2179 = vdwg.mxu0
    %2180 = vmatpush.bf16.msra.mxu0 %v1617
    %2181 = vmatpush.bf16.msra.mxu0 %v1610
    %2182 = vmatpush.bf16.msra.mxu0 %v1603
    %2183 = vmatpush.bf16.msra.mxu0 %v1596
    %2184 = vmatpush.bf16.msra.mxu0 %v1589
    %2185 = vmatpush.bf16.msra.mxu0 %v1582
    %2186 = vmatpush.bf16.msra.mxu0 %v1575
    %2187 = vmatpush.bf16.msra.mxu0 %v1568
    %2188 = vmatmul.bf16.gmra.mxu0 %v1061
    %v2189 = vpop.f32.mrf.mxu0
    %v2190 = vadd.f32 %v1209, %v2189
    %v2191 = vpop.f32.mrf.mxu0
    %v2192 = vadd.f32 %v1209, %v2191
    %2193 = vmatmul.bf16.gmra.mxu0 %v1063
    %v2194 = vpop.f32.mrf.mxu0
    %v2195 = vadd.f32 %v1209, %v2194
    %v2196 = vpop.f32.mrf.mxu0
    %v2197 = vadd.f32 %v1209, %v2196
    %2198 = vmatmul.bf16.gmra.mxu0 %v1065
    %v2199 = vpop.f32.mrf.mxu0
    %v2200 = vadd.f32 %v1209, %v2199
    %v2201 = vpop.f32.mrf.mxu0
    %v2202 = vadd.f32 %v1209, %v2201
    %2203 = vmatmul.bf16.gmra.mxu0 %v1067
    %v2204 = vpop.f32.mrf.mxu0
    %v2205 = vadd.f32 %v1209, %v2204
    %v2206 = vpop.f32.mrf.mxu0
    %v2207 = vadd.f32 %v1209, %v2206
    %2208 = vmatmul.bf16.gmra.mxu0 %v1069
    %v2209 = vpop.f32.mrf.mxu0
    %v2210 = vadd.f32 %v1209, %v2209
    %v2211 = vpop.f32.mrf.mxu0
    %v2212 = vadd.f32 %v1209, %v2211
    %2213 = vmatmul.bf16.gmra.mxu0 %v1071
    %v2214 = vpop.f32.mrf.mxu0
    %v2215 = vadd.f32 %v1209, %v2214
    %v2216 = vpop.f32.mrf.mxu0
    %v2217 = vadd.f32 %v1209, %v2216
    %2218 = vmatmul.bf16.gmra.mxu0 %v1073
    %v2219 = vpop.f32.mrf.mxu0
    %v2220 = vadd.f32 %v1209, %v2219
    %v2221 = vpop.f32.mrf.mxu0
    %v2222 = vadd.f32 %v1209, %v2221
    %2223 = vmatmul.bf16.gmra.mxu0 %v1075
    %v2224 = vpop.f32.mrf.mxu0
    %v2225 = vadd.f32 %v1209, %v2224
    %v2226 = vpop.f32.mrf.mxu0
    %v2227 = vadd.f32 %v1209, %v2226
    %2228 = vdwg.mxu0
    %2229 = vmatpush.bf16.msra.mxu0 %v1673
    %2230 = vmatpush.bf16.msra.mxu0 %v1666
    %2231 = vmatpush.bf16.msra.mxu0 %v1659
    %2232 = vmatpush.bf16.msra.mxu0 %v1652
    %2233 = vmatpush.bf16.msra.mxu0 %v1645
    %2234 = vmatpush.bf16.msra.mxu0 %v1638
    %2235 = vmatpush.bf16.msra.mxu0 %v1631
    %2236 = vmatpush.bf16.msra.mxu0 %v1624
    %2237 = vmatmul.bf16.gmra.mxu0 %v1062
    %v2238 = vpop.f32.mrf.mxu0
    %v2239 = vadd.f32 %v2190, %v2238
    %v2240 = vpop.f32.mrf.mxu0
    %v2241 = vadd.f32 %v2192, %v2240
    %2242 = vmatmul.bf16.gmra.mxu0 %v1064
    %v2243 = vpop.f32.mrf.mxu0
    %v2244 = vadd.f32 %v2195, %v2243
    %v2245 = vpop.f32.mrf.mxu0
    %v2246 = vadd.f32 %v2197, %v2245
    %2247 = vmatmul.bf16.gmra.mxu0 %v1066
    %v2248 = vpop.f32.mrf.mxu0
    %v2249 = vadd.f32 %v2200, %v2248
    %v2250 = vpop.f32.mrf.mxu0
    %v2251 = vadd.f32 %v2202, %v2250
    %2252 = vmatmul.bf16.gmra.mxu0 %v1068
    %v2253 = vpop.f32.mrf.mxu0
    %v2254 = vadd.f32 %v2205, %v2253
    %v2255 = vpop.f32.mrf.mxu0
    %v2256 = vadd.f32 %v2207, %v2255
    %2257 = vmatmul.bf16.gmra.mxu0 %v1070
    %v2258 = vpop.f32.mrf.mxu0
    %v2259 = vadd.f32 %v2210, %v2258
    %v2260 = vpop.f32.mrf.mxu0
    %v2261 = vadd.f32 %v2212, %v2260
    %2262 = vmatmul.bf16.gmra.mxu0 %v1072
    %v2263 = vpop.f32.mrf.mxu0
    %v2264 = vadd.f32 %v2215, %v2263
    %v2265 = vpop.f32.mrf.mxu0
    %v2266 = vadd.f32 %v2217, %v2265
    %2267 = vmatmul.bf16.gmra.mxu0 %v1074
    %v2268 = vpop.f32.mrf.mxu0
    %v2269 = vadd.f32 %v2220, %v2268
    %v2270 = vpop.f32.mrf.mxu0
    %v2271 = vadd.f32 %v2222, %v2270
    %2272 = vmatmul.bf16.gmra.mxu0 %v1076
    %v2273 = vpop.f32.mrf.mxu0
    %v2274 = vadd.f32 %v2225, %v2273
    %v2275 = vpop.f32.mrf.mxu0
    %v2276 = vadd.f32 %v2227, %v2275
    %2277 = vdwg.mxu0
    %2278 = vmatpush.bf16.msra.mxu0 %v1618
    %2279 = vmatpush.bf16.msra.mxu0 %v1611
    %2280 = vmatpush.bf16.msra.mxu0 %v1604
    %2281 = vmatpush.bf16.msra.mxu0 %v1597
    %2282 = vmatpush.bf16.msra.mxu0 %v1590
    %2283 = vmatpush.bf16.msra.mxu0 %v1583
    %2284 = vmatpush.bf16.msra.mxu0 %v1576
    %2285 = vmatpush.bf16.msra.mxu0 %v1569
    %2286 = vmatmul.bf16.gmra.mxu0 %v1061
    %v2287 = vpop.f32.mrf.mxu0
    %v2288 = vadd.f32 %v1210, %v2287
    %v2289 = vpop.f32.mrf.mxu0
    %v2290 = vadd.f32 %v1210, %v2289
    %2291 = vmatmul.bf16.gmra.mxu0 %v1063
    %v2292 = vpop.f32.mrf.mxu0
    %v2293 = vadd.f32 %v1210, %v2292
    %v2294 = vpop.f32.mrf.mxu0
    %v2295 = vadd.f32 %v1210, %v2294
    %2296 = vmatmul.bf16.gmra.mxu0 %v1065
    %v2297 = vpop.f32.mrf.mxu0
    %v2298 = vadd.f32 %v1210, %v2297
    %v2299 = vpop.f32.mrf.mxu0
    %v2300 = vadd.f32 %v1210, %v2299
    %2301 = vmatmul.bf16.gmra.mxu0 %v1067
    %v2302 = vpop.f32.mrf.mxu0
    %v2303 = vadd.f32 %v1210, %v2302
    %v2304 = vpop.f32.mrf.mxu0
    %v2305 = vadd.f32 %v1210, %v2304
    %2306 = vmatmul.bf16.gmra.mxu0 %v1069
    %v2307 = vpop.f32.mrf.mxu0
    %v2308 = vadd.f32 %v1210, %v2307
    %v2309 = vpop.f32.mrf.mxu0
    %v2310 = vadd.f32 %v1210, %v2309
    %2311 = vmatmul.bf16.gmra.mxu0 %v1071
    %v2312 = vpop.f32.mrf.mxu0
    %v2313 = vadd.f32 %v1210, %v2312
    %v2314 = vpop.f32.mrf.mxu0
    %v2315 = vadd.f32 %v1210, %v2314
    %2316 = vmatmul.bf16.gmra.mxu0 %v1073
    %v2317 = vpop.f32.mrf.mxu0
    %v2318 = vadd.f32 %v1210, %v2317
    %v2319 = vpop.f32.mrf.mxu0
    %v2320 = vadd.f32 %v1210, %v2319
    %2321 = vmatmul.bf16.gmra.mxu0 %v1075
    %v2322 = vpop.f32.mrf.mxu0
    %v2323 = vadd.f32 %v1210, %v2322
    %v2324 = vpop.f32.mrf.mxu0
    %v2325 = vadd.f32 %v1210, %v2324
    %2326 = vdwg.mxu0
    %2327 = vmatpush.bf16.msra.mxu0 %v1674
    %2328 = vmatpush.bf16.msra.mxu0 %v1667
    %2329 = vmatpush.bf16.msra.mxu0 %v1660
    %2330 = vmatpush.bf16.msra.mxu0 %v1653
    %2331 = vmatpush.bf16.msra.mxu0 %v1646
    %2332 = vmatpush.bf16.msra.mxu0 %v1639
    %2333 = vmatpush.bf16.msra.mxu0 %v1632
    %2334 = vmatpush.bf16.msra.mxu0 %v1625
    %2335 = vmatmul.bf16.gmra.mxu0 %v1062
    %v2336 = vpop.f32.mrf.mxu0
    %v2337 = vadd.f32 %v2288, %v2336
    %v2338 = vpop.f32.mrf.mxu0
    %v2339 = vadd.f32 %v2290, %v2338
    %2340 = vmatmul.bf16.gmra.mxu0 %v1064
    %v2341 = vpop.f32.mrf.mxu0
    %v2342 = vadd.f32 %v2293, %v2341
    %v2343 = vpop.f32.mrf.mxu0
    %v2344 = vadd.f32 %v2295, %v2343
    %2345 = vmatmul.bf16.gmra.mxu0 %v1066
    %v2346 = vpop.f32.mrf.mxu0
    %v2347 = vadd.f32 %v2298, %v2346
    %v2348 = vpop.f32.mrf.mxu0
    %v2349 = vadd.f32 %v2300, %v2348
    %2350 = vmatmul.bf16.gmra.mxu0 %v1068
    %v2351 = vpop.f32.mrf.mxu0
    %v2352 = vadd.f32 %v2303, %v2351
    %v2353 = vpop.f32.mrf.mxu0
    %v2354 = vadd.f32 %v2305, %v2353
    %2355 = vmatmul.bf16.gmra.mxu0 %v1070
    %v2356 = vpop.f32.mrf.mxu0
    %v2357 = vadd.f32 %v2308, %v2356
    %v2358 = vpop.f32.mrf.mxu0
    %v2359 = vadd.f32 %v2310, %v2358
    %2360 = vmatmul.bf16.gmra.mxu0 %v1072
    %v2361 = vpop.f32.mrf.mxu0
    %v2362 = vadd.f32 %v2313, %v2361
    %v2363 = vpop.f32.mrf.mxu0
    %v2364 = vadd.f32 %v2315, %v2363
    %2365 = vmatmul.bf16.gmra.mxu0 %v1074
    %v2366 = vpop.f32.mrf.mxu0
    %v2367 = vadd.f32 %v2318, %v2366
    %v2368 = vpop.f32.mrf.mxu0
    %v2369 = vadd.f32 %v2320, %v2368
    %2370 = vmatmul.bf16.gmra.mxu0 %v1076
    %v2371 = vpop.f32.mrf.mxu0
    %v2372 = vadd.f32 %v2323, %v2371
    %v2373 = vpop.f32.mrf.mxu0
    %v2374 = vadd.f32 %v2325, %v2373
    %2375 = vdwg.mxu0
    %2376 = vmatpush.bf16.msra.mxu0 %v1619
    %2377 = vmatpush.bf16.msra.mxu0 %v1612
    %2378 = vmatpush.bf16.msra.mxu0 %v1605
    %2379 = vmatpush.bf16.msra.mxu0 %v1598
    %2380 = vmatpush.bf16.msra.mxu0 %v1591
    %2381 = vmatpush.bf16.msra.mxu0 %v1584
    %2382 = vmatpush.bf16.msra.mxu0 %v1577
    %2383 = vmatpush.bf16.msra.mxu0 %v1570
    %2384 = vmatmul.bf16.gmra.mxu0 %v1061
    %v2385 = vpop.f32.mrf.mxu0
    %v2386 = vadd.f32 %v1211, %v2385
    %v2387 = vpop.f32.mrf.mxu0
    %v2388 = vadd.f32 %v1211, %v2387
    %2389 = vmatmul.bf16.gmra.mxu0 %v1063
    %v2390 = vpop.f32.mrf.mxu0
    %v2391 = vadd.f32 %v1211, %v2390
    %v2392 = vpop.f32.mrf.mxu0
    %v2393 = vadd.f32 %v1211, %v2392
    %2394 = vmatmul.bf16.gmra.mxu0 %v1065
    %v2395 = vpop.f32.mrf.mxu0
    %v2396 = vadd.f32 %v1211, %v2395
    %v2397 = vpop.f32.mrf.mxu0
    %v2398 = vadd.f32 %v1211, %v2397
    %2399 = vmatmul.bf16.gmra.mxu0 %v1067
    %v2400 = vpop.f32.mrf.mxu0
    %v2401 = vadd.f32 %v1211, %v2400
    %v2402 = vpop.f32.mrf.mxu0
    %v2403 = vadd.f32 %v1211, %v2402
    %2404 = vmatmul.bf16.gmra.mxu0 %v1069
    %v2405 = vpop.f32.mrf.mxu0
    %v2406 = vadd.f32 %v1211, %v2405
    %v2407 = vpop.f32.mrf.mxu0
    %v2408 = vadd.f32 %v1211, %v2407
    %2409 = vmatmul.bf16.gmra.mxu0 %v1071
    %v2410 = vpop.f32.mrf.mxu0
    %v2411 = vadd.f32 %v1211, %v2410
    %v2412 = vpop.f32.mrf.mxu0
    %v2413 = vadd.f32 %v1211, %v2412
    %2414 = vmatmul.bf16.gmra.mxu0 %v1073
    %v2415 = vpop.f32.mrf.mxu0
    %v2416 = vadd.f32 %v1211, %v2415
    %v2417 = vpop.f32.mrf.mxu0
    %v2418 = vadd.f32 %v1211, %v2417
    %2419 = vmatmul.bf16.gmra.mxu0 %v1075
    %v2420 = vpop.f32.mrf.mxu0
    %v2421 = vadd.f32 %v1211, %v2420
    %v2422 = vpop.f32.mrf.mxu0
    %v2423 = vadd.f32 %v1211, %v2422
    %2424 = vdwg.mxu0
    %2425 = vmatpush.bf16.msra.mxu0 %v1675
    %2426 = vmatpush.bf16.msra.mxu0 %v1668
    %2427 = vmatpush.bf16.msra.mxu0 %v1661
    %2428 = vmatpush.bf16.msra.mxu0 %v1654
    %2429 = vmatpush.bf16.msra.mxu0 %v1647
    %2430 = vmatpush.bf16.msra.mxu0 %v1640
    %2431 = vmatpush.bf16.msra.mxu0 %v1633
    %2432 = vmatpush.bf16.msra.mxu0 %v1626
    %2433 = vmatmul.bf16.gmra.mxu0 %v1062
    %v2434 = vpop.f32.mrf.mxu0
    %v2435 = vadd.f32 %v2386, %v2434
    %v2436 = vpop.f32.mrf.mxu0
    %v2437 = vadd.f32 %v2388, %v2436
    %2438 = vmatmul.bf16.gmra.mxu0 %v1064
    %v2439 = vpop.f32.mrf.mxu0
    %v2440 = vadd.f32 %v2391, %v2439
    %v2441 = vpop.f32.mrf.mxu0
    %v2442 = vadd.f32 %v2393, %v2441
    %2443 = vmatmul.bf16.gmra.mxu0 %v1066
    %v2444 = vpop.f32.mrf.mxu0
    %v2445 = vadd.f32 %v2396, %v2444
    %v2446 = vpop.f32.mrf.mxu0
    %v2447 = vadd.f32 %v2398, %v2446
    %2448 = vmatmul.bf16.gmra.mxu0 %v1068
    %v2449 = vpop.f32.mrf.mxu0
    %v2450 = vadd.f32 %v2401, %v2449
    %v2451 = vpop.f32.mrf.mxu0
    %v2452 = vadd.f32 %v2403, %v2451
    %2453 = vmatmul.bf16.gmra.mxu0 %v1070
    %v2454 = vpop.f32.mrf.mxu0
    %v2455 = vadd.f32 %v2406, %v2454
    %v2456 = vpop.f32.mrf.mxu0
    %v2457 = vadd.f32 %v2408, %v2456
    %2458 = vmatmul.bf16.gmra.mxu0 %v1072
    %v2459 = vpop.f32.mrf.mxu0
    %v2460 = vadd.f32 %v2411, %v2459
    %v2461 = vpop.f32.mrf.mxu0
    %v2462 = vadd.f32 %v2413, %v2461
    %2463 = vmatmul.bf16.gmra.mxu0 %v1074
    %v2464 = vpop.f32.mrf.mxu0
    %v2465 = vadd.f32 %v2416, %v2464
    %v2466 = vpop.f32.mrf.mxu0
    %v2467 = vadd.f32 %v2418, %v2466
    %2468 = vmatmul.bf16.gmra.mxu0 %v1076
    %v2469 = vpop.f32.mrf.mxu0
    %v2470 = vadd.f32 %v2421, %v2469
    %v2471 = vpop.f32.mrf.mxu0
    %v2472 = vadd.f32 %v2423, %v2471
    %2473 = vdwg.mxu0
    %v2474 = vsub.f32 0.0, %v1847
    %v2475 = vsub.f32 0.0, %v1945
    %v2476 = vsub.f32 0.0, %v2043
    %v2477 = vsub.f32 0.0, %v2141
    %v2478 = vsub.f32 0.0, %v2239
    %v2479 = vsub.f32 0.0, %v2337
    %v2480 = vsub.f32 0.0, %v2435
    %v2481 = vsub.f32 0.0, %v1849
    %v2482 = vsub.f32 0.0, %v1947
    %v2483 = vsub.f32 0.0, %v2045
    %v2484 = vsub.f32 0.0, %v2143
    %v2485 = vsub.f32 0.0, %v2241
    %v2486 = vsub.f32 0.0, %v2339
    %v2487 = vsub.f32 0.0, %v2437
    %v2488 = vsub.f32 0.0, %v1852
    %v2489 = vsub.f32 0.0, %v1950
    %v2490 = vsub.f32 0.0, %v2048
    %v2491 = vsub.f32 0.0, %v2146
    %v2492 = vsub.f32 0.0, %v2244
    %v2493 = vsub.f32 0.0, %v2342
    %v2494 = vsub.f32 0.0, %v2440
    %v2495 = vsub.f32 0.0, %v1854
    %v2496 = vsub.f32 0.0, %v1952
    %v2497 = vsub.f32 0.0, %v2050
    %v2498 = vsub.f32 0.0, %v2148
    %v2499 = vsub.f32 0.0, %v2246
    %v2500 = vsub.f32 0.0, %v2344
    %v2501 = vsub.f32 0.0, %v2442
    %v2502 = vsub.f32 0.0, %v1857
    %v2503 = vsub.f32 0.0, %v1955
    %v2504 = vsub.f32 0.0, %v2053
    %v2505 = vsub.f32 0.0, %v2151
    %v2506 = vsub.f32 0.0, %v2249
    %v2507 = vsub.f32 0.0, %v2347
    %v2508 = vsub.f32 0.0, %v2445
    %v2509 = vsub.f32 0.0, %v1859
    %v2510 = vsub.f32 0.0, %v1957
    %v2511 = vsub.f32 0.0, %v2055
    %v2512 = vsub.f32 0.0, %v2153
    %v2513 = vsub.f32 0.0, %v2251
    %v2514 = vsub.f32 0.0, %v2349
    %v2515 = vsub.f32 0.0, %v2447
    %v2516 = vsub.f32 0.0, %v1862
    %v2517 = vsub.f32 0.0, %v1960
    %v2518 = vsub.f32 0.0, %v2058
    %v2519 = vsub.f32 0.0, %v2156
    %v2520 = vsub.f32 0.0, %v2254
    %v2521 = vsub.f32 0.0, %v2352
    %v2522 = vsub.f32 0.0, %v2450
    %v2523 = vsub.f32 0.0, %v1864
    %v2524 = vsub.f32 0.0, %v1962
    %v2525 = vsub.f32 0.0, %v2060
    %v2526 = vsub.f32 0.0, %v2158
    %v2527 = vsub.f32 0.0, %v2256
    %v2528 = vsub.f32 0.0, %v2354
    %v2529 = vsub.f32 0.0, %v2452
    %v2530 = vsub.f32 0.0, %v1867
    %v2531 = vsub.f32 0.0, %v1965
    %v2532 = vsub.f32 0.0, %v2063
    %v2533 = vsub.f32 0.0, %v2161
    %v2534 = vsub.f32 0.0, %v2259
    %v2535 = vsub.f32 0.0, %v2357
    %v2536 = vsub.f32 0.0, %v2455
    %v2537 = vsub.f32 0.0, %v1869
    %v2538 = vsub.f32 0.0, %v1967
    %v2539 = vsub.f32 0.0, %v2065
    %v2540 = vsub.f32 0.0, %v2163
    %v2541 = vsub.f32 0.0, %v2261
    %v2542 = vsub.f32 0.0, %v2359
    %v2543 = vsub.f32 0.0, %v2457
    %v2544 = vsub.f32 0.0, %v1872
    %v2545 = vsub.f32 0.0, %v1970
    %v2546 = vsub.f32 0.0, %v2068
    %v2547 = vsub.f32 0.0, %v2166
    %v2548 = vsub.f32 0.0, %v2264
    %v2549 = vsub.f32 0.0, %v2362
    %v2550 = vsub.f32 0.0, %v2460
    %v2551 = vsub.f32 0.0, %v1874
    %v2552 = vsub.f32 0.0, %v1972
    %v2553 = vsub.f32 0.0, %v2070
    %v2554 = vsub.f32 0.0, %v2168
    %v2555 = vsub.f32 0.0, %v2266
    %v2556 = vsub.f32 0.0, %v2364
    %v2557 = vsub.f32 0.0, %v2462
    %v2558 = vsub.f32 0.0, %v1877
    %v2559 = vsub.f32 0.0, %v1975
    %v2560 = vsub.f32 0.0, %v2073
    %v2561 = vsub.f32 0.0, %v2171
    %v2562 = vsub.f32 0.0, %v2269
    %v2563 = vsub.f32 0.0, %v2367
    %v2564 = vsub.f32 0.0, %v2465
    %v2565 = vsub.f32 0.0, %v1879
    %v2566 = vsub.f32 0.0, %v1977
    %v2567 = vsub.f32 0.0, %v2075
    %v2568 = vsub.f32 0.0, %v2173
    %v2569 = vsub.f32 0.0, %v2271
    %v2570 = vsub.f32 0.0, %v2369
    %v2571 = vsub.f32 0.0, %v2467
    %v2572 = vsub.f32 0.0, %v1882
    %v2573 = vsub.f32 0.0, %v1980
    %v2574 = vsub.f32 0.0, %v2078
    %v2575 = vsub.f32 0.0, %v2176
    %v2576 = vsub.f32 0.0, %v2274
    %v2577 = vsub.f32 0.0, %v2372
    %v2578 = vsub.f32 0.0, %v2470
    %v2579 = vsub.f32 0.0, %v1884
    %v2580 = vsub.f32 0.0, %v1982
    %v2581 = vsub.f32 0.0, %v2080
    %v2582 = vsub.f32 0.0, %v2178
    %v2583 = vsub.f32 0.0, %v2276
    %v2584 = vsub.f32 0.0, %v2374
    %v2585 = vsub.f32 0.0, %v2472
    %v2586 = vmul.f32 %v2474, 1.442695
    %v2587 = vpow.pop %v2586
    %v2588 = vmul.f32 %v2475, 1.442695
    %v2589 = vpow.pop %v2588
    %v2590 = vmul.f32 %v2476, 1.442695
    %v2591 = vpow.pop %v2590
    %v2592 = vmul.f32 %v2477, 1.442695
    %v2593 = vpow.pop %v2592
    %v2594 = vmul.f32 %v2478, 1.442695
    %v2595 = vpow.pop %v2594
    %v2596 = vmul.f32 %v2479, 1.442695
    %v2597 = vpow.pop %v2596
    %v2598 = vmul.f32 %v2480, 1.442695
    %v2599 = vpow.pop %v2598
    %v2600 = vmul.f32 %v2481, 1.442695
    %v2601 = vpow.pop %v2600
    %v2602 = vmul.f32 %v2482, 1.442695
    %v2603 = vpow.pop %v2602
    %v2604 = vmul.f32 %v2483, 1.442695
    %v2605 = vpow.pop %v2604
    %v2606 = vmul.f32 %v2484, 1.442695
    %v2607 = vpow.pop %v2606
    %v2608 = vmul.f32 %v2485, 1.442695
    %v2609 = vpow.pop %v2608
    %v2610 = vmul.f32 %v2486, 1.442695
    %v2611 = vpow.pop %v2610
    %v2612 = vmul.f32 %v2487, 1.442695
    %v2613 = vpow.pop %v2612
    %v2614 = vmul.f32 %v2488, 1.442695
    %v2615 = vpow.pop %v2614
    %v2616 = vmul.f32 %v2489, 1.442695
    %v2617 = vpow.pop %v2616
    %v2618 = vmul.f32 %v2490, 1.442695
    %v2619 = vpow.pop %v2618
    %v2620 = vmul.f32 %v2491, 1.442695
    %v2621 = vpow.pop %v2620
    %v2622 = vmul.f32 %v2492, 1.442695
    %v2623 = vpow.pop %v2622
    %v2624 = vmul.f32 %v2493, 1.442695
    %v2625 = vpow.pop %v2624
    %v2626 = vmul.f32 %v2494, 1.442695
    %v2627 = vpow.pop %v2626
    %v2628 = vmul.f32 %v2495, 1.442695
    %v2629 = vpow.pop %v2628
    %v2630 = vmul.f32 %v2496, 1.442695
    %v2631 = vpow.pop %v2630
    %v2632 = vmul.f32 %v2497, 1.442695
    %v2633 = vpow.pop %v2632
    %v2634 = vmul.f32 %v2498, 1.442695
    %v2635 = vpow.pop %v2634
    %v2636 = vmul.f32 %v2499, 1.442695
    %v2637 = vpow.pop %v2636
    %v2638 = vmul.f32 %v2500, 1.442695
    %v2639 = vpow.pop %v2638
    %v2640 = vmul.f32 %v2501, 1.442695
    %v2641 = vpow.pop %v2640
    %v2642 = vmul.f32 %v2502, 1.442695
    %v2643 = vpow.pop %v2642
    %v2644 = vmul.f32 %v2503, 1.442695
    %v2645 = vpow.pop %v2644
    %v2646 = vmul.f32 %v2504, 1.442695
    %v2647 = vpow.pop %v2646
    %v2648 = vmul.f32 %v2505, 1.442695
    %v2649 = vpow.pop %v2648
    %v2650 = vmul.f32 %v2506, 1.442695
    %v2651 = vpow.pop %v2650
    %v2652 = vmul.f32 %v2507, 1.442695
    %v2653 = vpow.pop %v2652
    %v2654 = vmul.f32 %v2508, 1.442695
    %v2655 = vpow.pop %v2654
    %v2656 = vmul.f32 %v2509, 1.442695
    %v2657 = vpow.pop %v2656
    %v2658 = vmul.f32 %v2510, 1.442695
    %v2659 = vpow.pop %v2658
    %v2660 = vmul.f32 %v2511, 1.442695
    %v2661 = vpow.pop %v2660
    %v2662 = vmul.f32 %v2512, 1.442695
    %v2663 = vpow.pop %v2662
    %v2664 = vmul.f32 %v2513, 1.442695
    %v2665 = vpow.pop %v2664
    %v2666 = vmul.f32 %v2514, 1.442695
    %v2667 = vpow.pop %v2666
    %v2668 = vmul.f32 %v2515, 1.442695
    %v2669 = vpow.pop %v2668
    %v2670 = vmul.f32 %v2516, 1.442695
    %v2671 = vpow.pop %v2670
    %v2672 = vmul.f32 %v2517, 1.442695
    %v2673 = vpow.pop %v2672
    %v2674 = vmul.f32 %v2518, 1.442695
    %v2675 = vpow.pop %v2674
    %v2676 = vmul.f32 %v2519, 1.442695
    %v2677 = vpow.pop %v2676
    %v2678 = vmul.f32 %v2520, 1.442695
    %v2679 = vpow.pop %v2678
    %v2680 = vmul.f32 %v2521, 1.442695
    %v2681 = vpow.pop %v2680
    %v2682 = vmul.f32 %v2522, 1.442695
    %v2683 = vpow.pop %v2682
    %v2684 = vmul.f32 %v2523, 1.442695
    %v2685 = vpow.pop %v2684
    %v2686 = vmul.f32 %v2524, 1.442695
    %v2687 = vpow.pop %v2686
    %v2688 = vmul.f32 %v2525, 1.442695
    %v2689 = vpow.pop %v2688
    %v2690 = vmul.f32 %v2526, 1.442695
    %v2691 = vpow.pop %v2690
    %v2692 = vmul.f32 %v2527, 1.442695
    %v2693 = vpow.pop %v2692
    %v2694 = vmul.f32 %v2528, 1.442695
    %v2695 = vpow.pop %v2694
    %v2696 = vmul.f32 %v2529, 1.442695
    %v2697 = vpow.pop %v2696
    %v2698 = vmul.f32 %v2530, 1.442695
    %v2699 = vpow.pop %v2698
    %v2700 = vmul.f32 %v2531, 1.442695
    %v2701 = vpow.pop %v2700
    %v2702 = vmul.f32 %v2532, 1.442695
    %v2703 = vpow.pop %v2702
    %v2704 = vmul.f32 %v2533, 1.442695
    %v2705 = vpow.pop %v2704
    %v2706 = vmul.f32 %v2534, 1.442695
    %v2707 = vpow.pop %v2706
    %v2708 = vmul.f32 %v2535, 1.442695
    %v2709 = vpow.pop %v2708
    %v2710 = vmul.f32 %v2536, 1.442695
    %v2711 = vpow.pop %v2710
    %v2712 = vmul.f32 %v2537, 1.442695
    %v2713 = vpow.pop %v2712
    %v2714 = vmul.f32 %v2538, 1.442695
    %v2715 = vpow.pop %v2714
    %v2716 = vmul.f32 %v2539, 1.442695
    %v2717 = vpow.pop %v2716
    %v2718 = vmul.f32 %v2540, 1.442695
    %v2719 = vpow.pop %v2718
    %v2720 = vmul.f32 %v2541, 1.442695
    %v2721 = vpow.pop %v2720
    %v2722 = vmul.f32 %v2542, 1.442695
    %v2723 = vpow.pop %v2722
    %v2724 = vmul.f32 %v2543, 1.442695
    %v2725 = vpow.pop %v2724
    %v2726 = vmul.f32 %v2544, 1.442695
    %v2727 = vpow.pop %v2726
    %v2728 = vmul.f32 %v2545, 1.442695
    %v2729 = vpow.pop %v2728
    %v2730 = vmul.f32 %v2546, 1.442695
    %v2731 = vpow.pop %v2730
    %v2732 = vmul.f32 %v2547, 1.442695
    %v2733 = vpow.pop %v2732
    %v2734 = vmul.f32 %v2548, 1.442695
    %v2735 = vpow.pop %v2734
    %v2736 = vmul.f32 %v2549, 1.442695
    %v2737 = vpow.pop %v2736
    %v2738 = vmul.f32 %v2550, 1.442695
    %v2739 = vpow.pop %v2738
    %v2740 = vmul.f32 %v2551, 1.442695
    %v2741 = vpow.pop %v2740
    %v2742 = vmul.f32 %v2552, 1.442695
    %v2743 = vpow.pop %v2742
    %v2744 = vmul.f32 %v2553, 1.442695
    %v2745 = vpow.pop %v2744
    %v2746 = vmul.f32 %v2554, 1.442695
    %v2747 = vpow.pop %v2746
    %v2748 = vmul.f32 %v2555, 1.442695
    %v2749 = vpow.pop %v2748
    %v2750 = vmul.f32 %v2556, 1.442695
    %v2751 = vpow.pop %v2750
    %v2752 = vmul.f32 %v2557, 1.442695
    %v2753 = vpow.pop %v2752
    %v2754 = vmul.f32 %v2558, 1.442695
    %v2755 = vpow.pop %v2754
    %v2756 = vmul.f32 %v2559, 1.442695
    %v2757 = vpow.pop %v2756
    %v2758 = vmul.f32 %v2560, 1.442695
    %v2759 = vpow.pop %v2758
    %v2760 = vmul.f32 %v2561, 1.442695
    %v2761 = vpow.pop %v2760
    %v2762 = vmul.f32 %v2562, 1.442695
    %v2763 = vpow.pop %v2762
    %v2764 = vmul.f32 %v2563, 1.442695
    %v2765 = vpow.pop %v2764
    %v2766 = vmul.f32 %v2564, 1.442695
    %v2767 = vpow.pop %v2766
    %v2768 = vmul.f32 %v2565, 1.442695
    %v2769 = vpow.pop %v2768
    %v2770 = vmul.f32 %v2566, 1.442695
    %v2771 = vpow.pop %v2770
    %v2772 = vmul.f32 %v2567, 1.442695
    %v2773 = vpow.pop %v2772
    %v2774 = vmul.f32 %v2568, 1.442695
    %v2775 = vpow.pop %v2774
    %v2776 = vmul.f32 %v2569, 1.442695
    %v2777 = vpow.pop %v2776
    %v2778 = vmul.f32 %v2570, 1.442695
    %v2779 = vpow.pop %v2778
    %v2780 = vmul.f32 %v2571, 1.442695
    %v2781 = vpow.pop %v2780
    %v2782 = vmul.f32 %v2572, 1.442695
    %v2783 = vpow.pop %v2782
    %v2784 = vmul.f32 %v2573, 1.442695
    %v2785 = vpow.pop %v2784
    %v2786 = vmul.f32 %v2574, 1.442695
    %v2787 = vpow.pop %v2786
    %v2788 = vmul.f32 %v2575, 1.442695
    %v2789 = vpow.pop %v2788
    %v2790 = vmul.f32 %v2576, 1.442695
    %v2791 = vpow.pop %v2790
    %v2792 = vmul.f32 %v2577, 1.442695
    %v2793 = vpow.pop %v2792
    %v2794 = vmul.f32 %v2578, 1.442695
    %v2795 = vpow.pop %v2794
    %v2796 = vmul.f32 %v2579, 1.442695
    %v2797 = vpow.pop %v2796
    %v2798 = vmul.f32 %v2580, 1.442695
    %v2799 = vpow.pop %v2798
    %v2800 = vmul.f32 %v2581, 1.442695
    %v2801 = vpow.pop %v2800
    %v2802 = vmul.f32 %v2582, 1.442695
    %v2803 = vpow.pop %v2802
    %v2804 = vmul.f32 %v2583, 1.442695
    %v2805 = vpow.pop %v2804
    %v2806 = vmul.f32 %v2584, 1.442695
    %v2807 = vpow.pop %v2806
    %v2808 = vmul.f32 %v2585, 1.442695
    %v2809 = vpow.pop %v2808
    %v2810 = vadd.f32 %v2587, 1.0
    %v2811 = vadd.f32 %v2589, 1.0
    %v2812 = vadd.f32 %v2591, 1.0
    %v2813 = vadd.f32 %v2593, 1.0
    %v2814 = vadd.f32 %v2595, 1.0
    %v2815 = vadd.f32 %v2597, 1.0
    %v2816 = vadd.f32 %v2599, 1.0
    %v2817 = vadd.f32 %v2601, 1.0
    %v2818 = vadd.f32 %v2603, 1.0
    %v2819 = vadd.f32 %v2605, 1.0
    %v2820 = vadd.f32 %v2607, 1.0
    %v2821 = vadd.f32 %v2609, 1.0
    %v2822 = vadd.f32 %v2611, 1.0
    %v2823 = vadd.f32 %v2613, 1.0
    %v2824 = vadd.f32 %v2615, 1.0
    %v2825 = vadd.f32 %v2617, 1.0
    %v2826 = vadd.f32 %v2619, 1.0
    %v2827 = vadd.f32 %v2621, 1.0
    %v2828 = vadd.f32 %v2623, 1.0
    %v2829 = vadd.f32 %v2625, 1.0
    %v2830 = vadd.f32 %v2627, 1.0
    %v2831 = vadd.f32 %v2629, 1.0
    %v2832 = vadd.f32 %v2631, 1.0
    %v2833 = vadd.f32 %v2633, 1.0
    %v2834 = vadd.f32 %v2635, 1.0
    %v2835 = vadd.f32 %v2637, 1.0
    %v2836 = vadd.f32 %v2639, 1.0
    %v2837 = vadd.f32 %v2641, 1.0
    %v2838 = vadd.f32 %v2643, 1.0
    %v2839 = vadd.f32 %v2645, 1.0
    %v2840 = vadd.f32 %v2647, 1.0
    %v2841 = vadd.f32 %v2649, 1.0
    %v2842 = vadd.f32 %v2651, 1.0
    %v2843 = vadd.f32 %v2653, 1.0
    %v2844 = vadd.f32 %v2655, 1.0
    %v2845 = vadd.f32 %v2657, 1.0
    %v2846 = vadd.f32 %v2659, 1.0
    %v2847 = vadd.f32 %v2661, 1.0
    %v2848 = vadd.f32 %v2663, 1.0
    %v2849 = vadd.f32 %v2665, 1.0
    %v2850 = vadd.f32 %v2667, 1.0
    %v2851 = vadd.f32 %v2669, 1.0
    %v2852 = vadd.f32 %v2671, 1.0
    %v2853 = vadd.f32 %v2673, 1.0
    %v2854 = vadd.f32 %v2675, 1.0
    %v2855 = vadd.f32 %v2677, 1.0
    %v2856 = vadd.f32 %v2679, 1.0
    %v2857 = vadd.f32 %v2681, 1.0
    %v2858 = vadd.f32 %v2683, 1.0
    %v2859 = vadd.f32 %v2685, 1.0
    %v2860 = vadd.f32 %v2687, 1.0
    %v2861 = vadd.f32 %v2689, 1.0
    %v2862 = vadd.f32 %v2691, 1.0
    %v2863 = vadd.f32 %v2693, 1.0
    %v2864 = vadd.f32 %v2695, 1.0
    %v2865 = vadd.f32 %v2697, 1.0
    %v2866 = vadd.f32 %v2699, 1.0
    %v2867 = vadd.f32 %v2701, 1.0
    %v2868 = vadd.f32 %v2703, 1.0
    %v2869 = vadd.f32 %v2705, 1.0
    %v2870 = vadd.f32 %v2707, 1.0
    %v2871 = vadd.f32 %v2709, 1.0
    %v2872 = vadd.f32 %v2711, 1.0
    %v2873 = vadd.f32 %v2713, 1.0
    %v2874 = vadd.f32 %v2715, 1.0
    %v2875 = vadd.f32 %v2717, 1.0
    %v2876 = vadd.f32 %v2719, 1.0
    %v2877 = vadd.f32 %v2721, 1.0
    %v2878 = vadd.f32 %v2723, 1.0
    %v2879 = vadd.f32 %v2725, 1.0
    %v2880 = vadd.f32 %v2727, 1.0
    %v2881 = vadd.f32 %v2729, 1.0
    %v2882 = vadd.f32 %v2731, 1.0
    %v2883 = vadd.f32 %v2733, 1.0
    %v2884 = vadd.f32 %v2735, 1.0
    %v2885 = vadd.f32 %v2737, 1.0
    %v2886 = vadd.f32 %v2739, 1.0
    %v2887 = vadd.f32 %v2741, 1.0
    %v2888 = vadd.f32 %v2743, 1.0
    %v2889 = vadd.f32 %v2745, 1.0
    %v2890 = vadd.f32 %v2747, 1.0
    %v2891 = vadd.f32 %v2749, 1.0
    %v2892 = vadd.f32 %v2751, 1.0
    %v2893 = vadd.f32 %v2753, 1.0
    %v2894 = vadd.f32 %v2755, 1.0
    %v2895 = vadd.f32 %v2757, 1.0
    %v2896 = vadd.f32 %v2759, 1.0
    %v2897 = vadd.f32 %v2761, 1.0
    %v2898 = vadd.f32 %v2763, 1.0
    %v2899 = vadd.f32 %v2765, 1.0
    %v2900 = vadd.f32 %v2767, 1.0
    %v2901 = vadd.f32 %v2769, 1.0
    %v2902 = vadd.f32 %v2771, 1.0
    %v2903 = vadd.f32 %v2773, 1.0
    %v2904 = vadd.f32 %v2775, 1.0
    %v2905 = vadd.f32 %v2777, 1.0
    %v2906 = vadd.f32 %v2779, 1.0
    %v2907 = vadd.f32 %v2781, 1.0
    %v2908 = vadd.f32 %v2783, 1.0
    %v2909 = vadd.f32 %v2785, 1.0
    %v2910 = vadd.f32 %v2787, 1.0
    %v2911 = vadd.f32 %v2789, 1.0
    %v2912 = vadd.f32 %v2791, 1.0
    %v2913 = vadd.f32 %v2793, 1.0
    %v2914 = vadd.f32 %v2795, 1.0
    %v2915 = vadd.f32 %v2797, 1.0
    %v2916 = vadd.f32 %v2799, 1.0
    %v2917 = vadd.f32 %v2801, 1.0
    %v2918 = vadd.f32 %v2803, 1.0
    %v2919 = vadd.f32 %v2805, 1.0
    %v2920 = vadd.f32 %v2807, 1.0
    %v2921 = vadd.f32 %v2809, 1.0
    %v2922 = vrcp.pop %v2810
    %v2923 = vrcp.pop %v2811
    %v2924 = vrcp.pop %v2812
    %v2925 = vrcp.pop %v2813
    %v2926 = vrcp.pop %v2814
    %v2927 = vrcp.pop %v2815
    %v2928 = vrcp.pop %v2816
    %v2929 = vrcp.pop %v2817
    %v2930 = vrcp.pop %v2818
    %v2931 = vrcp.pop %v2819
    %v2932 = vrcp.pop %v2820
    %v2933 = vrcp.pop %v2821
    %v2934 = vrcp.pop %v2822
    %v2935 = vrcp.pop %v2823
    %v2936 = vrcp.pop %v2824
    %v2937 = vrcp.pop %v2825
    %v2938 = vrcp.pop %v2826
    %v2939 = vrcp.pop %v2827
    %v2940 = vrcp.pop %v2828
    %v2941 = vrcp.pop %v2829
    %v2942 = vrcp.pop %v2830
    %v2943 = vrcp.pop %v2831
    %v2944 = vrcp.pop %v2832
    %v2945 = vrcp.pop %v2833
    %v2946 = vrcp.pop %v2834
    %v2947 = vrcp.pop %v2835
    %v2948 = vrcp.pop %v2836
    %v2949 = vrcp.pop %v2837
    %v2950 = vrcp.pop %v2838
    %v2951 = vrcp.pop %v2839
    %v2952 = vrcp.pop %v2840
    %v2953 = vrcp.pop %v2841
    %v2954 = vrcp.pop %v2842
    %v2955 = vrcp.pop %v2843
    %v2956 = vrcp.pop %v2844
    %v2957 = vrcp.pop %v2845
    %v2958 = vrcp.pop %v2846
    %v2959 = vrcp.pop %v2847
    %v2960 = vrcp.pop %v2848
    %v2961 = vrcp.pop %v2849
    %v2962 = vrcp.pop %v2850
    %v2963 = vrcp.pop %v2851
    %v2964 = vrcp.pop %v2852
    %v2965 = vrcp.pop %v2853
    %v2966 = vrcp.pop %v2854
    %v2967 = vrcp.pop %v2855
    %v2968 = vrcp.pop %v2856
    %v2969 = vrcp.pop %v2857
    %v2970 = vrcp.pop %v2858
    %v2971 = vrcp.pop %v2859
    %v2972 = vrcp.pop %v2860
    %v2973 = vrcp.pop %v2861
    %v2974 = vrcp.pop %v2862
    %v2975 = vrcp.pop %v2863
    %v2976 = vrcp.pop %v2864
    %v2977 = vrcp.pop %v2865
    %v2978 = vrcp.pop %v2866
    %v2979 = vrcp.pop %v2867
    %v2980 = vrcp.pop %v2868
    %v2981 = vrcp.pop %v2869
    %v2982 = vrcp.pop %v2870
    %v2983 = vrcp.pop %v2871
    %v2984 = vrcp.pop %v2872
    %v2985 = vrcp.pop %v2873
    %v2986 = vrcp.pop %v2874
    %v2987 = vrcp.pop %v2875
    %v2988 = vrcp.pop %v2876
    %v2989 = vrcp.pop %v2877
    %v2990 = vrcp.pop %v2878
    %v2991 = vrcp.pop %v2879
    %v2992 = vrcp.pop %v2880
    %v2993 = vrcp.pop %v2881
    %v2994 = vrcp.pop %v2882
    %v2995 = vrcp.pop %v2883
    %v2996 = vrcp.pop %v2884
    %v2997 = vrcp.pop %v2885
    %v2998 = vrcp.pop %v2886
    %v2999 = vrcp.pop %v2887
    %v3000 = vrcp.pop %v2888
    %v3001 = vrcp.pop %v2889
    %v3002 = vrcp.pop %v2890
    %v3003 = vrcp.pop %v2891
    %v3004 = vrcp.pop %v2892
    %v3005 = vrcp.pop %v2893
    %v3006 = vrcp.pop %v2894
    %v3007 = vrcp.pop %v2895
    %v3008 = vrcp.pop %v2896
    %v3009 = vrcp.pop %v2897
    %v3010 = vrcp.pop %v2898
    %v3011 = vrcp.pop %v2899
    %v3012 = vrcp.pop %v2900
    %v3013 = vrcp.pop %v2901
    %v3014 = vrcp.pop %v2902
    %v3015 = vrcp.pop %v2903
    %v3016 = vrcp.pop %v2904
    %v3017 = vrcp.pop %v2905
    %v3018 = vrcp.pop %v2906
    %v3019 = vrcp.pop %v2907
    %v3020 = vrcp.pop %v2908
    %v3021 = vrcp.pop %v2909
    %v3022 = vrcp.pop %v2910
    %v3023 = vrcp.pop %v2911
    %v3024 = vrcp.pop %v2912
    %v3025 = vrcp.pop %v2913
    %v3026 = vrcp.pop %v2914
    %v3027 = vrcp.pop %v2915
    %v3028 = vrcp.pop %v2916
    %v3029 = vrcp.pop %v2917
    %v3030 = vrcp.pop %v2918
    %v3031 = vrcp.pop %v2919
    %v3032 = vrcp.pop %v2920
    %v3033 = vrcp.pop %v2921
    %3034 = vst [vmem:[#allocation8] sm:$0xff] %v2922
    %3035 = vst [vmem:[#allocation8 + $0x8] sm:$0xff] %v2923
    %3036 = vst [vmem:[#allocation8 + $0x10] sm:$0xff] %v2924
    %3037 = vst [vmem:[#allocation8 + $0x18] sm:$0xff] %v2925
    %3038 = vst [vmem:[#allocation8 + $0x20] sm:$0xff] %v2926
    %3039 = vst [vmem:[#allocation8 + $0x28] sm:$0xff] %v2927
    %3040 = vst [vmem:[#allocation8 + $0x30] sm:$0xff] %v2928
    %3041 = vst [vmem:[#allocation8 + $0x38] sm:$0xff] %v2929
    %3042 = vst [vmem:[#allocation8 + $0x40] sm:$0xff] %v2930
    %3043 = vst [vmem:[#allocation8 + $0x48] sm:$0xff] %v2931
    %3044 = vst [vmem:[#allocation8 + $0x50] sm:$0xff] %v2932
    %3045 = vst [vmem:[#allocation8 + $0x58] sm:$0xff] %v2933
    %3046 = vst [vmem:[#allocation8 + $0x60] sm:$0xff] %v2934
    %3047 = vst [vmem:[#allocation8 + $0x68] sm:$0xff] %v2935
    %3048 = vst [vmem:[#allocation8 + $0x70] sm:$0xff] %v2936
    %3049 = vst [vmem:[#allocation8 + $0x78] sm:$0xff] %v2937
    %3050 = vst [vmem:[#allocation8 + $0x80] sm:$0xff] %v2938
    %3051 = vst [vmem:[#allocation8 + $0x88] sm:$0xff] %v2939
    %3052 = vst [vmem:[#allocation8 + $0x90] sm:$0xff] %v2940
    %3053 = vst [vmem:[#allocation8 + $0x98] sm:$0xff] %v2941
    %3054 = vst [vmem:[#allocation8 + $0xa0] sm:$0xff] %v2942
    %3055 = vst [vmem:[#allocation8 + $0xa8] sm:$0xff] %v2943
    %3056 = vst [vmem:[#allocation8 + $0xb0] sm:$0xff] %v2944
    %3057 = vst [vmem:[#allocation8 + $0xb8] sm:$0xff] %v2945
    %3058 = vst [vmem:[#allocation8 + $0xc0] sm:$0xff] %v2946
    %3059 = vst [vmem:[#allocation8 + $0xc8] sm:$0xff] %v2947
    %3060 = vst [vmem:[#allocation8 + $0xd0] sm:$0xff] %v2948
    %3061 = vst [vmem:[#allocation8 + $0xd8] sm:$0xff] %v2949
    %3062 = vst [vmem:[#allocation8 + $0xe0] sm:$0xff] %v2950
    %3063 = vst [vmem:[#allocation8 + $0xe8] sm:$0xff] %v2951
    %3064 = vst [vmem:[#allocation8 + $0xf0] sm:$0xff] %v2952
    %3065 = vst [vmem:[#allocation8 + $0xf8] sm:$0xff] %v2953
    %3066 = vst [vmem:[#allocation8 + $0x100] sm:$0xff] %v2954
    %3067 = vst [vmem:[#allocation8 + $0x108] sm:$0xff] %v2955
    %3068 = vst [vmem:[#allocation8 + $0x110] sm:$0xff] %v2956
    %3069 = vst [vmem:[#allocation8 + $0x118] sm:$0xff] %v2957
    %3070 = vst [vmem:[#allocation8 + $0x120] sm:$0xff] %v2958
    %3071 = vst [vmem:[#allocation8 + $0x128] sm:$0xff] %v2959
    %3072 = vst [vmem:[#allocation8 + $0x130] sm:$0xff] %v2960
    %3073 = vst [vmem:[#allocation8 + $0x138] sm:$0xff] %v2961
    %3074 = vst [vmem:[#allocation8 + $0x140] sm:$0xff] %v2962
    %3075 = vst [vmem:[#allocation8 + $0x148] sm:$0xff] %v2963
    %3076 = vst [vmem:[#allocation8 + $0x150] sm:$0xff] %v2964
    %3077 = vst [vmem:[#allocation8 + $0x158] sm:$0xff] %v2965
    %3078 = vst [vmem:[#allocation8 + $0x160] sm:$0xff] %v2966
    %3079 = vst [vmem:[#allocation8 + $0x168] sm:$0xff] %v2967
    %3080 = vst [vmem:[#allocation8 + $0x170] sm:$0xff] %v2968
    %3081 = vst [vmem:[#allocation8 + $0x178] sm:$0xff] %v2969
    %3082 = vst [vmem:[#allocation8 + $0x180] sm:$0xff] %v2970
    %3083 = vst [vmem:[#allocation8 + $0x188] sm:$0xff] %v2971
    %3084 = vst [vmem:[#allocation8 + $0x190] sm:$0xff] %v2972
    %3085 = vst [vmem:[#allocation8 + $0x198] sm:$0xff] %v2973
    %3086 = vst [vmem:[#allocation8 + $0x1a0] sm:$0xff] %v2974
    %3087 = vst [vmem:[#allocation8 + $0x1a8] sm:$0xff] %v2975
    %3088 = vst [vmem:[#allocation8 + $0x1b0] sm:$0xff] %v2976
    %3089 = vst [vmem:[#allocation8 + $0x1b8] sm:$0xff] %v2977
    %3090 = vst [vmem:[#allocation8 + $0x1c0] sm:$0xff] %v2978
    %3091 = vst [vmem:[#allocation8 + $0x1c8] sm:$0xff] %v2979
    %3092 = vst [vmem:[#allocation8 + $0x1d0] sm:$0xff] %v2980
    %3093 = vst [vmem:[#allocation8 + $0x1d8] sm:$0xff] %v2981
    %3094 = vst [vmem:[#allocation8 + $0x1e0] sm:$0xff] %v2982
    %3095 = vst [vmem:[#allocation8 + $0x1e8] sm:$0xff] %v2983
    %3096 = vst [vmem:[#allocation8 + $0x1f0] sm:$0xff] %v2984
    %3097 = vst [vmem:[#allocation8 + $0x1f8] sm:$0xff] %v2985
    %3098 = vst [vmem:[#allocation8 + $0x200] sm:$0xff] %v2986
    %3099 = vst [vmem:[#allocation8 + $0x208] sm:$0xff] %v2987
    %3100 = vst [vmem:[#allocation8 + $0x210] sm:$0xff] %v2988
    %3101 = vst [vmem:[#allocation8 + $0x218] sm:$0xff] %v2989
    %3102 = vst [vmem:[#allocation8 + $0x220] sm:$0xff] %v2990
    %3103 = vst [vmem:[#allocation8 + $0x228] sm:$0xff] %v2991
    %3104 = vst [vmem:[#allocation8 + $0x230] sm:$0xff] %v2992
    %3105 = vst [vmem:[#allocation8 + $0x238] sm:$0xff] %v2993
    %3106 = vst [vmem:[#allocation8 + $0x240] sm:$0xff] %v2994
    %3107 = vst [vmem:[#allocation8 + $0x248] sm:$0xff] %v2995
    %3108 = vst [vmem:[#allocation8 + $0x250] sm:$0xff] %v2996
    %3109 = vst [vmem:[#allocation8 + $0x258] sm:$0xff] %v2997
    %3110 = vst [vmem:[#allocation8 + $0x260] sm:$0xff] %v2998
    %3111 = vst [vmem:[#allocation8 + $0x268] sm:$0xff] %v2999
    %3112 = vst [vmem:[#allocation8 + $0x270] sm:$0xff] %v3000
    %3113 = vst [vmem:[#allocation8 + $0x278] sm:$0xff] %v3001
    %3114 = vst [vmem:[#allocation8 + $0x280] sm:$0xff] %v3002
    %3115 = vst [vmem:[#allocation8 + $0x288] sm:$0xff] %v3003
    %3116 = vst [vmem:[#allocation8 + $0x290] sm:$0xff] %v3004
    %3117 = vst [vmem:[#allocation8 + $0x298] sm:$0xff] %v3005
    %3118 = vst [vmem:[#allocation8 + $0x2a0] sm:$0xff] %v3006
    %3119 = vst [vmem:[#allocation8 + $0x2a8] sm:$0xff] %v3007
    %3120 = vst [vmem:[#allocation8 + $0x2b0] sm:$0xff] %v3008
    %3121 = vst [vmem:[#allocation8 + $0x2b8] sm:$0xff] %v3009
    %3122 = vst [vmem:[#allocation8 + $0x2c0] sm:$0xff] %v3010
    %3123 = vst [vmem:[#allocation8 + $0x2c8] sm:$0xff] %v3011
    %3124 = vst [vmem:[#allocation8 + $0x2d0] sm:$0xff] %v3012
    %3125 = vst [vmem:[#allocation8 + $0x2d8] sm:$0xff] %v3013
    %3126 = vst [vmem:[#allocation8 + $0x2e0] sm:$0xff] %v3014
    %3127 = vst [vmem:[#allocation8 + $0x2e8] sm:$0xff] %v3015
    %3128 = vst [vmem:[#allocation8 + $0x2f0] sm:$0xff] %v3016
    %3129 = vst [vmem:[#allocation8 + $0x2f8] sm:$0xff] %v3017
    %3130 = vst [vmem:[#allocation8 + $0x300] sm:$0xff] %v3018
    %3131 = vst [vmem:[#allocation8 + $0x308] sm:$0xff] %v3019
    %3132 = vst [vmem:[#allocation8 + $0x310] sm:$0xff] %v3020
    %3133 = vst [vmem:[#allocation8 + $0x318] sm:$0xff] %v3021
    %3134 = vst [vmem:[#allocation8 + $0x320] sm:$0xff] %v3022
    %3135 = vst [vmem:[#allocation8 + $0x328] sm:$0xff] %v3023
    %3136 = vst [vmem:[#allocation8 + $0x330] sm:$0xff] %v3024
    %3137 = vst [vmem:[#allocation8 + $0x338] sm:$0xff] %v3025
    %3138 = vst [vmem:[#allocation8 + $0x340] sm:$0xff] %v3026
    %3139 = vst [vmem:[#allocation8 + $0x348] sm:$0xff] %v3027
    %3140 = vst [vmem:[#allocation8 + $0x350] sm:$0xff] %v3028
    %3141 = vst [vmem:[#allocation8 + $0x358] sm:$0xff] %v3029
    %3142 = vst [vmem:[#allocation8 + $0x360] sm:$0xff] %v3030
    %3143 = vst [vmem:[#allocation8 + $0x368] sm:$0xff] %v3031
    %3144 = vst [vmem:[#allocation8 + $0x370] sm:$0xff] %v3032
    %3145 = vst [vmem:[#allocation8 + $0x378] sm:$0xff] %v3033
    // Predicated region
    $region38: #{tpu_custom_call.1} parent=1 // pred_check
      _
    $region39: #{tpu_custom_call.1} parent=1 // pred_check_branch
      %3147 = sbr.rel (0) target = $region41
    $region40: #{tpu_custom_call.1} parent=1 // pred_region
      %3149 = vsyncadd [#allocation4], 0
      %s3150 = sshll.u32 [#allocation8], 4
      %s3151 = int_to_ptr.vmem [resolvable:$true] %s3150
      %s3152 = sshll.u32 %s6, 4
      %s3153 = int_to_ptr.hbm [resolvable:$true] %s3152
      %3158 = dma.vmem_to_hbm [thread:$0]  %s3151, 14336, %s3153, [#allocation4], 896, 896, 56
    $region41: #{tpu_custom_call.1} parent=1 // pred_fallthru
      _
    // Predicated region
    $region42: #{tpu_custom_call.1} parent=1 // pred_check
      _
    $region43: #{tpu_custom_call.1} parent=1 // pred_check_branch
      %3160 = sbr.rel (0) target = $region45
    $region44: #{tpu_custom_call.1} parent=1 // pred_region
      %3162 = dma.done [#allocation4], 14336
    $region45: #{tpu_custom_call.1} parent=1 // pred_fallthru
      _
    %3163 = vsyncpa [#allocation3], 1
    %3164 = vsyncpa [#allocation6], 1
    %3165 = vsyncpa [#allocation4], 1

</llo_original>
